<compile_context>
chip_gen: v5e
topology: v5e:2x2
jax: 0.10.0
libtpu: 0.0.40
codegen_flags: <defaults>
</compile_context>

<pallas_src>
import functools

import jax
import jax.numpy as jnp
from jax.experimental import pallas as pl
from jax.experimental.pallas import tpu as pltpu


def _mlp_kernel(x_ref, w1_ref, b1_ref, w2_ref, b2_ref, w3_ref, b3_ref, o_ref,
                *, precision):
    # x_ref: (8, tb) batch tile, batch on the lane axis.
    # Activation dtype for the bias/ReLU epilogues: bf16 in the bf16 path
    # (bf16-capable VPU on v6e/v7x), f32 otherwise (no-op casts then).
    act_dtype = w2_ref.dtype
    x = x_ref[...]

    # Layer 1: (64, 8) @ (8, tb) -> (64, tb), f32 accumulation on the MXU.
    h1 = jnp.dot(w1_ref[...], x, preferred_element_type=jnp.float32,
                 precision=precision)
    h1 = jnp.maximum(h1.astype(act_dtype) + b1_ref[...], 0.0)

    # Layer 2: (64, 64) @ (64, tb) -> (64, tb).
    h2 = jnp.dot(w2_ref[...], h1, preferred_element_type=jnp.float32,
                 precision=precision)
    h2 = jnp.maximum(h2.astype(act_dtype) + b2_ref[...], 0.0)

    # Layer 3 (out_features = 1): (1, 64) @ (64, tb) -> (1, tb) on the idle MXU.
    out = jnp.dot(w3_ref[...], h2, preferred_element_type=jnp.float32,
                  precision=precision)
    o_ref[...] = (out + b3_ref[...]).astype(o_ref.dtype)   # (1, tb) lane-dense


def _pick_tile(B, tb):
    """Lane tile (multiple of 128) and number of grid steps."""
    b_round = -(-B // 128) * 128
    if tb is None:
        # Big tiles amortize per-grid-step overhead; keep >= 2 tiles when the
        # batch allows it (dual-TensorCore v7x); cap at 16384 lanes
        # (~9.3 MiB/step f32) so we stay well inside scoped VMEM everywhere.
        half = (b_round // 256) * 128
        tb = min(16384, max(128, half))
    tb_eff = max(128, min((tb // 128) * 128, b_round))
    ntiles = -(-B // tb_eff)
    return tb_eff, ntiles


def surrogate_net_forward(x, params, *, tb=None, use_bf16=False,
                          feature_major=False):
    """Forward pass of SurrogateNet.

    x: (B, 6) float32 (or (6, B) if feature_major=True).
    params: PyTorch-oriented weights, see init_params().
    Returns (B, 1) float32.
    """
    if feature_major:
        F, B = x.shape
    else:
        B, F = x.shape
    assert F == 6
    F_pad = 8

    tb_eff, ntiles = _pick_tile(B, tb)
    B_pad = ntiles * tb_eff

    in_dtype = jnp.bfloat16 if use_bf16 else jnp.float32

    # Single fused layout pass over x: transpose (if needed) + pad to
    # (8, B_pad) + dtype cast.  Written as one expression so XLA fuses it
    # into a single copy instead of three HBM round-trips.
    xT_src = x if feature_major else x.T
    xT = jnp.pad(xT_src, ((0, F_pad - F), (0, B_pad - B))).astype(in_dtype)

    # Weights (tiny one-off preps).
    w1 = jnp.pad(params["w1"], ((0, 0), (0, F_pad - F)))   # (64, 8)
    b1 = params["b1"]                                       # (64, 1)
    w2 = params["w2"]                                       # (64, 64)
    b2 = params["b2"]                                       # (64, 1)
    w3 = params["w3"]                                       # (1, 64)
    b3 = params["b3"]                                       # (1, 1)  (stays f32)

    if use_bf16:
        # bf16 MXU operands + bf16 bias/ReLU epilogues (v6e/v7x).  On v5e keep
        # use_bf16=False: its VPU has no bf16 and the pack ops are pure cost.
        w1, b1, w2, b2, w3 = (a.astype(jnp.bfloat16) for a in (w1, b1, w2, b2, w3))
        precision = None
    else:
        # f32 path: MXU is ~90% idle here, so multi-pass full-precision f32
        # matmul is effectively free and keeps the result bit-tight.
        precision = jax.lax.Precision.HIGHEST

    # Small constant operands: full-array blocks, VMEM-resident across steps.
    full = lambda a: pl.BlockSpec(a.shape, lambda i: (0, 0))

    # VMEM budget per grid step (double-buffered x/out tiles + f32 hiddens).
    itemsize = 2 if use_bf16 else 4
    per_step_bytes = (2 * F_pad * tb_eff * itemsize     # x tile, double buffered
                      + 2 * tb_eff * 4                  # out tile, double buffered
                      + 2 * 64 * tb_eff * 4             # h1/h2 live (f32 acc)
                      + 20_000)                         # weights + slack
    vmem_limit = int(min(64 << 20, max(32 << 20, 2 * per_step_bytes)))

    flops = 2 * B_pad * (F_pad * 64 + 64 * 64 + 64)
    bytes_accessed = int(sum(int(a.size) * a.dtype.itemsize
                             for a in (xT, w1, b1, w2, b2, w3, b3)) + B_pad * 4)

    out2d = pl.pallas_call(
        functools.partial(_mlp_kernel, precision=precision),
        out_shape=jax.ShapeDtypeStruct((1, B_pad), jnp.float32),
        grid_spec=pltpu.PrefetchScalarGridSpec(
            num_scalar_prefetch=0,
            grid=(ntiles,),
            in_specs=[
                pl.BlockSpec((F_pad, tb_eff), lambda i: (0, i)),   # x batch tile
                full(w1), full(b1),
                full(w2), full(b2),
                full(w3), full(b3),
            ],
            out_specs=pl.BlockSpec((1, tb_eff), lambda i: (0, i)),
        ),
        compiler_params=pltpu.CompilerParams(
            dimension_semantics=("parallel",),
            vmem_limit_bytes=vmem_limit),
        cost_estimate=pl.CostEstimate(
            flops=flops, transcendentals=0, bytes_accessed=bytes_accessed),
    )(xT, w1, b1, w2, b2, w3, b3)

    # Back to the PyTorch (B, 1) convention; drop padded columns (cheap: 4 B/elem).
    return out2d[0, :B].reshape(B, 1)


def init_params(key):
    """PyTorch nn.Linear default init: U(-1/sqrt(fan_in), +1/sqrt(fan_in))."""
    def linear(k, fan_in, fan_out):
        kw, kb = jax.random.split(k)
        bound = 1.0 / (fan_in ** 0.5)
        w = jax.random.uniform(kw, (fan_out, fan_in), jnp.float32, -bound, bound)
        b = jax.random.uniform(kb, (fan_out, 1), jnp.float32, -bound, bound)
        return w, b

    k1, k2, k3 = jax.random.split(key, 3)
    w1, b1 = linear(k1, 6, 64)    # (64, 6),  (64, 1)
    w2, b2 = linear(k2, 64, 64)   # (64, 64), (64, 1)
    w3, b3 = linear(k3, 64, 1)    # (1, 64),  (1, 1)
    return {"w1": w1, "b1": b1, "w2": w2, "b2": b2, "w3": w3, "b3": b3}


def _reference(x, p):
    h1 = jnp.maximum(x @ p["w1"].T + p["b1"].T, 0.0)
    h2 = jnp.maximum(h1 @ p["w2"].T + p["b2"].T, 0.0)
    return h2 @ p["w3"].T + p["b3"].T


if __name__ == "__main__":
    key = jax.random.PRNGKey(0)
    kx, kp = jax.random.split(key)

    B = 200   # not a multiple of 128 -> exercises batch padding; small & fast
    x = jax.random.normal(kx, (B, 6), jnp.float32)
    params = init_params(kp)

    ref = _reference(x, params)

    # f32 path, explicit small tile -> multi-tile grid + padding path.
    out_f32 = jax.block_until_ready(surrogate_net_forward(x, params, tb=128))
    assert out_f32.shape == (B, 1)
    assert jnp.allclose(out_f32, ref, atol=1e-4, rtol=1e-4), "f32 mismatch vs reference"

    # f32 path, auto tile selection (>= 2 tiles when the batch allows it).
    out_auto = jax.block_until_ready(surrogate_net_forward(x, params))
    assert jnp.allclose(out_auto, ref, atol=1e-4, rtol=1e-4), "auto-tile mismatch"

    # Feature-major input path (no wrapper transpose).
    out_fm = jax.block_until_ready(
        surrogate_net_forward(x.T, params, feature_major=True))
    assert jnp.allclose(out_fm, ref, atol=1e-4, rtol=1e-4), "feature-major mismatch"

    # bf16 MXU-operand + bf16-epilogue path (f32 accumulation), for v6e/v7x.
    out_bf16 = jax.block_until_ready(surrogate_net_forward(x, params, use_bf16=True))
    assert out_bf16.shape == (B, 1)
    assert jnp.allclose(out_bf16, ref, atol=5e-2, rtol=5e-2), "bf16 mismatch vs reference"

    print("KERNEL_OK")
</pallas_src>

<mosaic_0001>
module attributes {stable_mosaic.version = 11 : i64} {
  func.func @_mlp_kernel(%arg0: i32, %arg1: memref<8x128xf32, #tpu.memory_space<vmem>>, %arg2: memref<64x8xf32, #tpu.memory_space<vmem>>, %arg3: memref<64x1xf32, #tpu.memory_space<vmem>>, %arg4: memref<64x64xf32, #tpu.memory_space<vmem>>, %arg5: memref<64x1xf32, #tpu.memory_space<vmem>>, %arg6: memref<1x64xf32, #tpu.memory_space<vmem>>, %arg7: memref<1x1xf32, #tpu.memory_space<vmem>>, %arg8: memref<1x128xf32, #tpu.memory_space<vmem>>) attributes {dimension_semantics = [#tpu.dimension_semantics<parallel>], iteration_bounds = array<i64: 2>, scalar_prefetch = 0 : i64, scratch_operands = 0 : i64, tpu.core_type = #tpu.core_type<tc>, window_params = [{transform_indices = @transform_0, window_bounds = array<i64: 8, 128>}, {pipeline_mode = #tpu.pipeline_mode<synchronous>, transform_indices = @transform_1, window_bounds = array<i64: 64, 8>}, {pipeline_mode = #tpu.pipeline_mode<synchronous>, transform_indices = @transform_2, window_bounds = array<i64: 64, 1>}, {pipeline_mode = #tpu.pipeline_mode<synchronous>, transform_indices = @transform_3, window_bounds = array<i64: 64, 64>}, {pipeline_mode = #tpu.pipeline_mode<synchronous>, transform_indices = @transform_4, window_bounds = array<i64: 64, 1>}, {pipeline_mode = #tpu.pipeline_mode<synchronous>, transform_indices = @transform_5, window_bounds = array<i64: 1, 64>}, {pipeline_mode = #tpu.pipeline_mode<synchronous>, transform_indices = @transform_6, window_bounds = array<i64: 1, 1>}, {transform_indices = @transform_7, window_bounds = array<i64: 1, 128>}]} {
    %c0 = arith.constant 0 : index
    %c0_0 = arith.constant 0 : index
    %0 = vector.load %arg1[%c0, %c0_0] : memref<8x128xf32, #tpu.memory_space<vmem>>, vector<8x128xf32>
    %c0_1 = arith.constant 0 : index
    %c0_2 = arith.constant 0 : index
    %1 = vector.load %arg2[%c0_1, %c0_2] : memref<64x8xf32, #tpu.memory_space<vmem>>, vector<64x8xf32>
    %cst = arith.constant dense<0.000000e+00> : vector<64x128xf32>
    %2 = tpu.matmul %1, %0, %cst {dimension_numbers = #tpu.dot_dimension_numbers<[1], [0], [0], [1], [0, 0, 1, 1], [], []>, precision = #tpu.contract_precision<fp32>} : vector<64x8xf32>, vector<8x128xf32>, vector<64x128xf32> -> vector<64x128xf32>
    %c0_3 = arith.constant 0 : index
    %c0_4 = arith.constant 0 : index
    %3 = vector.load %arg3[%c0_3, %c0_4] : memref<64x1xf32, #tpu.memory_space<vmem>>, vector<64x1xf32>
    %4 = vector.broadcast %3 : vector<64x1xf32> to vector<64x128xf32>
    %5 = arith.addf %2, %4 : vector<64x128xf32>
    %cst_5 = arith.constant 0.000000e+00 : f32
    %6 = vector.broadcast %cst_5 : f32 to vector<64x128xf32>
    %7 = arith.maximumf %5, %6 : vector<64x128xf32>
    %c0_6 = arith.constant 0 : index
    %c0_7 = arith.constant 0 : index
    %8 = vector.load %arg4[%c0_6, %c0_7] : memref<64x64xf32, #tpu.memory_space<vmem>>, vector<64x64xf32>
    %cst_8 = arith.constant dense<0.000000e+00> : vector<64x128xf32>
    %9 = tpu.matmul %8, %7, %cst_8 {dimension_numbers = #tpu.dot_dimension_numbers<[1], [0], [0], [1], [0, 0, 1, 1], [], []>, precision = #tpu.contract_precision<fp32>} : vector<64x64xf32>, vector<64x128xf32>, vector<64x128xf32> -> vector<64x128xf32>
    %c0_9 = arith.constant 0 : index
    %c0_10 = arith.constant 0 : index
    %10 = vector.load %arg5[%c0_9, %c0_10] : memref<64x1xf32, #tpu.memory_space<vmem>>, vector<64x1xf32>
    %11 = vector.broadcast %10 : vector<64x1xf32> to vector<64x128xf32>
    %12 = arith.addf %9, %11 : vector<64x128xf32>
    %cst_11 = arith.constant 0.000000e+00 : f32
    %13 = vector.broadcast %cst_11 : f32 to vector<64x128xf32>
    %14 = arith.maximumf %12, %13 : vector<64x128xf32>
    %c0_12 = arith.constant 0 : index
    %c0_13 = arith.constant 0 : index
    %15 = vector.load %arg6[%c0_12, %c0_13] : memref<1x64xf32, #tpu.memory_space<vmem>>, vector<1x64xf32>
    %cst_14 = arith.constant dense<0.000000e+00> : vector<1x128xf32>
    %16 = tpu.matmul %15, %14, %cst_14 {dimension_numbers = #tpu.dot_dimension_numbers<[1], [0], [0], [1], [0, 0, 1, 1], [], []>, precision = #tpu.contract_precision<fp32>} : vector<1x64xf32>, vector<64x128xf32>, vector<1x128xf32> -> vector<1x128xf32>
    %c0_15 = arith.constant 0 : index
    %c0_16 = arith.constant 0 : index
    %17 = vector.load %arg7[%c0_15, %c0_16] : memref<1x1xf32, #tpu.memory_space<vmem>>, vector<1x1xf32>
    %18 = vector.broadcast %17 : vector<1x1xf32> to vector<1x128xf32>
    %19 = arith.addf %16, %18 : vector<1x128xf32>
    %c0_17 = arith.constant 0 : index
    %c0_18 = arith.constant 0 : index
    %20 = vector.load %arg8[%c0_17, %c0_18] : memref<1x128xf32, #tpu.memory_space<vmem>>, vector<1x128xf32>
    tpu.vector_store %arg8[%c0_17, %c0_18], %19 {strides = array<i32>} : memref<1x128xf32, #tpu.memory_space<vmem>>, vector<1x128xf32>,
    return
  }
  func.func @transform_0(%arg0: i32) -> (i32, i32) {
    %c0_i32 = arith.constant 0 : i32
    %c0_i32_0 = arith.constant 0 : i32
    return %c0_i32, %arg0 : i32, i32
  }
  func.func @transform_1(%arg0: i32) -> (i32, i32) {
    %c0_i32 = arith.constant 0 : i32
    %c0_i32_0 = arith.constant 0 : i32
    %c0_i32_1 = arith.constant 0 : i32
    return %c0_i32, %c0_i32_0 : i32, i32
  }
  func.func @transform_2(%arg0: i32) -> (i32, i32) {
    %c0_i32 = arith.constant 0 : i32
    %c0_i32_0 = arith.constant 0 : i32
    %c0_i32_1 = arith.constant 0 : i32
    return %c0_i32, %c0_i32_0 : i32, i32
  }
  func.func @transform_3(%arg0: i32) -> (i32, i32) {
    %c0_i32 = arith.constant 0 : i32
    %c0_i32_0 = arith.constant 0 : i32
    %c0_i32_1 = arith.constant 0 : i32
    return %c0_i32, %c0_i32_0 : i32, i32
  }
  func.func @transform_4(%arg0: i32) -> (i32, i32) {
    %c0_i32 = arith.constant 0 : i32
    %c0_i32_0 = arith.constant 0 : i32
    %c0_i32_1 = arith.constant 0 : i32
    return %c0_i32, %c0_i32_0 : i32, i32
  }
  func.func @transform_5(%arg0: i32) -> (i32, i32) {
    %c0_i32 = arith.constant 0 : i32
    %c0_i32_0 = arith.constant 0 : i32
    %c0_i32_1 = arith.constant 0 : i32
    return %c0_i32, %c0_i32_0 : i32, i32
  }
  func.func @transform_6(%arg0: i32) -> (i32, i32) {
    %c0_i32 = arith.constant 0 : i32
    %c0_i32_0 = arith.constant 0 : i32
    %c0_i32_1 = arith.constant 0 : i32
    return %c0_i32, %c0_i32_0 : i32, i32
  }
  func.func @transform_7(%arg0: i32) -> (i32, i32) {
    %c0_i32 = arith.constant 0 : i32
    %c0_i32_0 = arith.constant 0 : i32
    return %c0_i32, %arg0 : i32, i32
  }
}

</mosaic_0001>

<llo_original>
// kernel: tpu_custom_call.1
$region0: #{tpu_custom_call.1}
  #allocation0 [shape = 'u32[]', space=smem, size = 0x4, offset = 0x4, fixed_abs, tag = 'smem constant byte address 0x4 - core index']
  #allocation1 [shape = 'u32[72,128]{1,0:T(1,128)}', space=vmem, size = 0x9000, scoped, tag = 'internal scratch']
  #allocation2 [shape = 'f32[1,1]{1,0:T(1,128)S(1)}', space=vmem, size = 0x200, scoped, tag = 'scoped memory for tpu_custom_call.1']
  %s0 = inlined_call_operand.vmem [shape: f32[8,256], index: 0, kind: input, shape index: {}]
  %s1 = inlined_call_operand.vmem [shape: f32[64,8], index: 1, kind: input, shape index: {}]
  %s2 = inlined_call_operand.vmem [shape: f32[64,1], index: 2, kind: input, shape index: {}]
  %s3 = inlined_call_operand.vmem [shape: f32[64,64], index: 3, kind: input, shape index: {}]
  %s4 = inlined_call_operand.vmem [shape: f32[64,1], index: 4, kind: input, shape index: {}]
  %s5 = inlined_call_operand.vmem [shape: f32[1,64], index: 5, kind: input, shape index: {}]
  %s6 = inlined_call_operand.<no memory space> [shape: f32[1,1], index: 6, kind: input, shape index: {}]
  %s7 = inlined_call_operand.hbm [shape: f32[1,256], index: 7, kind: output, shape index: {}]
  %s8 = sld [smem:[#allocation0]]
  $region61: #{tpu_custom_call.1} parent=0
    _
  %s10 = ssub.s32 1, %s8
  %s11 = scalar_select 0, %s10, %s8
  %v12 = vstv %s6
  %13 = vst [vmem:[#allocation2] sm:$0x1] %v12
  $region1: #{tpu_custom_call.1} parent=0
    #allocation3 [shape = 'u8[1024]{0}', space=vmem, size = 0x400, scoped, tag = 'output window, operand 0']
    #allocation4 [shape = 's32[2]{0}', space=sflag, size = 0x8, scoped, tag = 'scoped memory for tpu_custom_call.1']
    %14 = vsyncpa [#allocation4], 0
    %s15 = scalar_lea.sflag [#allocation4], 1
    %16 = vsyncpa %s15, 0
    loop: start=0, step=1, limit=4
    $region2: #{tpu_custom_call.1} parent=1 // loop_pre_header
      _
    $region3: #{tpu_custom_call.1} parent=1 // loop_header
      %s18 = sphi 0, %s22
      %p19 = scmp.ge.s32.totalorder %s18, 4
      %s28 = sphi 0, %s30
      %s31 = sphi 0, %s28
      %s32 = sphi 0, %s31
      %s48 = sphi 0, %s32
      %s52 = sphi 0, %s52
      %s54 = sphi 0, %s52
      %s55 = sphi 0, %s54
      %s69 = sphi 0, %s55
      %s73 = sphi 0, %s73
      %s75 = sphi 0, %s73
      %s76 = sphi 0, %s75
      %s90 = sphi 0, %s76
      %s94 = sphi 0, %s94
      %s96 = sphi 0, %s94
      %s97 = sphi 0, %s96
      %s111 = sphi 0, %s97
      %s115 = sphi 0, %s115
      %s117 = sphi 0, %s115
      %s118 = sphi 0, %s117
      %s132 = sphi 0, %s118
      %s136 = sphi 0, %s136
      %s138 = sphi 0, %s136
      %s139 = sphi 0, %s138
      %s153 = sphi 0, %s139
      %s157 = sphi 0, %s157
      %s159 = sphi 0, %s157
      %s160 = sphi 0, %s159
      %s174 = sphi 0, %s160
      %s180 = sphi 0, %s182
      %s183 = sphi 0, %s180
      %s184 = sphi 0, %s183
      %s200 = sphi 0, %s184
    $region4: #{tpu_custom_call.1} parent=1 // loop_header_branch
      %21 = sbr.rel (%p19) target = $region8
    $region5: #{tpu_custom_call.1} parent=1 // loop_body
      %s23 = ssub.s32 %s18, 1
      %s24 = ssub.s32 %s18, 2
      %s25 = sadd.s32 %s18, 1
      %s26 = ssub.s32 %s18, %s25
      %p27 = scmp.eq.s32.totalorder %s26, 0
      %s29 = sadd.s32 %s28, 1
      %s30 = scalar_select %p27, %s28, %s29
      %p33 = pneg %p27
      %p34 = scmp.eq.s32.totalorder %s18, 1
      %p35 = por %p33, %p34
      %p36 = scmp.ne.s32.totalorder %s28, %s31
      %p37 = scmp.eq.s32.totalorder %s18, 0
      %p38 = por %p36, %p37
      %p39 = scmp.ne.s32.totalorder %s28, %s31
      %p40 = scmp.eq.s32.totalorder %s23, 1
      %p41 = por %p39, %p40
      %p42 = scmp.ne.s32.totalorder %s31, %s32
      %p43 = scmp.eq.s32.totalorder %s23, 0
      %p44 = por %p42, %p43
      %p45 = scmp.ne.s32.totalorder %s31, %s32
      %p46 = scmp.eq.s32.totalorder %s24, 1
      %p47 = por %p45, %p46
      %p49 = scmp.ne.s32.totalorder %s32, %s48
      %p50 = scmp.eq.s32.totalorder %s24, 0
      %p51 = por %p49, %p50
      %s53 = sadd.s32 %s52, 1
      %p56 = scmp.eq.s32.totalorder %s18, 1
      %p57 = scmp.ne.s32.totalorder %s52, %s54
      %p58 = scmp.eq.s32.totalorder %s18, 0
      %p59 = por %p57, %p58
      %p60 = scmp.ne.s32.totalorder %s52, %s54
      %p61 = scmp.eq.s32.totalorder %s23, 1
      %p62 = por %p60, %p61
      %p63 = scmp.ne.s32.totalorder %s54, %s55
      %p64 = scmp.eq.s32.totalorder %s23, 0
      %p65 = por %p63, %p64
      %p66 = scmp.ne.s32.totalorder %s54, %s55
      %p67 = scmp.eq.s32.totalorder %s24, 1
      %p68 = por %p66, %p67
      %p70 = scmp.ne.s32.totalorder %s55, %s69
      %p71 = scmp.eq.s32.totalorder %s24, 0
      %p72 = por %p70, %p71
      %s74 = sadd.s32 %s73, 1
      %p77 = scmp.eq.s32.totalorder %s18, 1
      %p78 = scmp.ne.s32.totalorder %s73, %s75
      %p79 = scmp.eq.s32.totalorder %s18, 0
      %p80 = por %p78, %p79
      %p81 = scmp.ne.s32.totalorder %s73, %s75
      %p82 = scmp.eq.s32.totalorder %s23, 1
      %p83 = por %p81, %p82
      %p84 = scmp.ne.s32.totalorder %s75, %s76
      %p85 = scmp.eq.s32.totalorder %s23, 0
      %p86 = por %p84, %p85
      %p87 = scmp.ne.s32.totalorder %s75, %s76
      %p88 = scmp.eq.s32.totalorder %s24, 1
      %p89 = por %p87, %p88
      %p91 = scmp.ne.s32.totalorder %s76, %s90
      %p92 = scmp.eq.s32.totalorder %s24, 0
      %p93 = por %p91, %p92
      %s95 = sadd.s32 %s94, 1
      %p98 = scmp.eq.s32.totalorder %s18, 1
      %p99 = scmp.ne.s32.totalorder %s94, %s96
      %p100 = scmp.eq.s32.totalorder %s18, 0
      %p101 = por %p99, %p100
      %p102 = scmp.ne.s32.totalorder %s94, %s96
      %p103 = scmp.eq.s32.totalorder %s23, 1
      %p104 = por %p102, %p103
      %p105 = scmp.ne.s32.totalorder %s96, %s97
      %p106 = scmp.eq.s32.totalorder %s23, 0
      %p107 = por %p105, %p106
      %p108 = scmp.ne.s32.totalorder %s96, %s97
      %p109 = scmp.eq.s32.totalorder %s24, 1
      %p110 = por %p108, %p109
      %p112 = scmp.ne.s32.totalorder %s97, %s111
      %p113 = scmp.eq.s32.totalorder %s24, 0
      %p114 = por %p112, %p113
      %s116 = sadd.s32 %s115, 1
      %p119 = scmp.eq.s32.totalorder %s18, 1
      %p120 = scmp.ne.s32.totalorder %s115, %s117
      %p121 = scmp.eq.s32.totalorder %s18, 0
      %p122 = por %p120, %p121
      %p123 = scmp.ne.s32.totalorder %s115, %s117
      %p124 = scmp.eq.s32.totalorder %s23, 1
      %p125 = por %p123, %p124
      %p126 = scmp.ne.s32.totalorder %s117, %s118
      %p127 = scmp.eq.s32.totalorder %s23, 0
      %p128 = por %p126, %p127
      %p129 = scmp.ne.s32.totalorder %s117, %s118
      %p130 = scmp.eq.s32.totalorder %s24, 1
      %p131 = por %p129, %p130
      %p133 = scmp.ne.s32.totalorder %s118, %s132
      %p134 = scmp.eq.s32.totalorder %s24, 0
      %p135 = por %p133, %p134
      %s137 = sadd.s32 %s136, 1
      %p140 = scmp.eq.s32.totalorder %s18, 1
      %p141 = scmp.ne.s32.totalorder %s136, %s138
      %p142 = scmp.eq.s32.totalorder %s18, 0
      %p143 = por %p141, %p142
      %p144 = scmp.ne.s32.totalorder %s136, %s138
      %p145 = scmp.eq.s32.totalorder %s23, 1
      %p146 = por %p144, %p145
      %p147 = scmp.ne.s32.totalorder %s138, %s139
      %p148 = scmp.eq.s32.totalorder %s23, 0
      %p149 = por %p147, %p148
      %p150 = scmp.ne.s32.totalorder %s138, %s139
      %p151 = scmp.eq.s32.totalorder %s24, 1
      %p152 = por %p150, %p151
      %p154 = scmp.ne.s32.totalorder %s139, %s153
      %p155 = scmp.eq.s32.totalorder %s24, 0
      %p156 = por %p154, %p155
      %s158 = sadd.s32 %s157, 1
      %p161 = scmp.eq.s32.totalorder %s18, 1
      %p162 = scmp.ne.s32.totalorder %s157, %s159
      %p163 = scmp.eq.s32.totalorder %s18, 0
      %p164 = por %p162, %p163
      %p165 = scmp.ne.s32.totalorder %s157, %s159
      %p166 = scmp.eq.s32.totalorder %s23, 1
      %p167 = por %p165, %p166
      %p168 = scmp.ne.s32.totalorder %s159, %s160
      %p169 = scmp.eq.s32.totalorder %s23, 0
      %p170 = por %p168, %p169
      %p171 = scmp.ne.s32.totalorder %s159, %s160
      %p172 = scmp.eq.s32.totalorder %s24, 1
      %p173 = por %p171, %p172
      %p175 = scmp.ne.s32.totalorder %s160, %s174
      %p176 = scmp.eq.s32.totalorder %s24, 0
      %p177 = por %p175, %p176
      %s178 = ssub.s32 %s18, %s25
      %p179 = scmp.eq.s32.totalorder %s178, 0
      %s181 = sadd.s32 %s180, 1
      %s182 = scalar_select %p179, %s180, %s181
      %p185 = pneg %p179
      %p186 = scmp.eq.s32.totalorder %s18, 1
      %p187 = por %p185, %p186
      %p188 = scmp.ne.s32.totalorder %s180, %s183
      %p189 = scmp.eq.s32.totalorder %s18, 0
      %p190 = por %p188, %p189
      %p191 = scmp.ne.s32.totalorder %s180, %s183
      %p192 = scmp.eq.s32.totalorder %s23, 1
      %p193 = por %p191, %p192
      %p194 = scmp.ne.s32.totalorder %s183, %s184
      %p195 = scmp.eq.s32.totalorder %s23, 0
      %p196 = por %p194, %p195
      %p197 = scmp.ne.s32.totalorder %s183, %s184
      %p198 = scmp.eq.s32.totalorder %s24, 1
      %p199 = por %p197, %p198
      %p201 = scmp.ne.s32.totalorder %s184, %s200
      %p202 = scmp.eq.s32.totalorder %s24, 0
      %p203 = por %p201, %p202
      %p204 = scmp.le.s32.totalorder 1, %s18
      %p205 = scmp.lt.s32.totalorder %s18, 3
      %p206 = pnand %p204, %p205
      %p207 = pneg %p206
      // Predicated region
      $region9: #{tpu_custom_call.1} parent=5 // pred_check
        _
      $region10: #{tpu_custom_call.1} parent=5 // pred_check_branch
        %209 = sbr.rel (%p206) target = $region12
      $region11: #{tpu_custom_call.1} parent=5 // pred_region
        %s210 = ssub.s32 %s18, 1
        // Predicated region
        $region13: #{tpu_custom_call.1} parent=11 // pred_check
          %p211 = pneg %p65
        $region14: #{tpu_custom_call.1} parent=11 // pred_check_branch
          %213 = sbr.rel (%p211) target = $region16
        $region15: #{tpu_custom_call.1} parent=11 // pred_region
          _
        $region16: #{tpu_custom_call.1} parent=11 // pred_fallthru
          _
        // Predicated region
        $region17: #{tpu_custom_call.1} parent=11 // pred_check
          %p214 = pneg %p86
        $region18: #{tpu_custom_call.1} parent=11 // pred_check_branch
          %216 = sbr.rel (%p214) target = $region20
        $region19: #{tpu_custom_call.1} parent=11 // pred_region
          _
        $region20: #{tpu_custom_call.1} parent=11 // pred_fallthru
          _
        // Predicated region
        $region21: #{tpu_custom_call.1} parent=11 // pred_check
          %p217 = pneg %p107
        $region22: #{tpu_custom_call.1} parent=11 // pred_check_branch
          %219 = sbr.rel (%p217) target = $region24
        $region23: #{tpu_custom_call.1} parent=11 // pred_region
          _
        $region24: #{tpu_custom_call.1} parent=11 // pred_fallthru
          _
        // Predicated region
        $region25: #{tpu_custom_call.1} parent=11 // pred_check
          %p220 = pneg %p128
        $region26: #{tpu_custom_call.1} parent=11 // pred_check_branch
          %222 = sbr.rel (%p220) target = $region28
        $region27: #{tpu_custom_call.1} parent=11 // pred_region
          _
        $region28: #{tpu_custom_call.1} parent=11 // pred_fallthru
          _
        // Predicated region
        $region29: #{tpu_custom_call.1} parent=11 // pred_check
          %p223 = pneg %p149
        $region30: #{tpu_custom_call.1} parent=11 // pred_check_branch
          %225 = sbr.rel (%p223) target = $region32
        $region31: #{tpu_custom_call.1} parent=11 // pred_region
          _
        $region32: #{tpu_custom_call.1} parent=11 // pred_fallthru
          _
        // Predicated region
        $region33: #{tpu_custom_call.1} parent=11 // pred_check
          %p226 = pneg %p170
        $region34: #{tpu_custom_call.1} parent=11 // pred_check_branch
          %228 = sbr.rel (%p226) target = $region36
        $region35: #{tpu_custom_call.1} parent=11 // pred_region
          _
        $region36: #{tpu_custom_call.1} parent=11 // pred_fallthru
          _
      $region12: #{tpu_custom_call.1} parent=5 // pred_fallthru
        _
      %p229 = scmp.lt.s32.totalorder %s18, 2
      // Predicated region
      $region37: #{tpu_custom_call.1} parent=5 // pred_check
        %p230 = pneg %p229
      $region38: #{tpu_custom_call.1} parent=5 // pred_check_branch
        %232 = sbr.rel (%p230) target = $region40
      $region39: #{tpu_custom_call.1} parent=5 // pred_region
        // Predicated region
        $region41: #{tpu_custom_call.1} parent=39 // pred_check
          %p233 = pneg %p38
        $region42: #{tpu_custom_call.1} parent=39 // pred_check_branch
          %235 = sbr.rel (%p233) target = $region44
        $region43: #{tpu_custom_call.1} parent=39 // pred_region
          %p236 = scmp.lt.s32.totalorder %s18, 1
          %s237 = scalar_select %p236, %s18, 1
          %s238 = smul.addr %s237, 8
          %s239 = scalar_lea.vmem %s0, %s238
        $region44: #{tpu_custom_call.1} parent=39 // pred_fallthru
          _
      $region40: #{tpu_custom_call.1} parent=5 // pred_fallthru
        _
      %p240 = scmp.le.s32.totalorder 1, %s18
      %p241 = scmp.lt.s32.totalorder %s18, 3
      %p242 = pnand %p240, %p241
      %p243 = pneg %p242
      // Predicated region
      $region45: #{tpu_custom_call.1} parent=5 // pred_check
        _
      $region46: #{tpu_custom_call.1} parent=5 // pred_check_branch
        %245 = sbr.rel (%p242) target = $region48
      $region47: #{tpu_custom_call.1} parent=5 // pred_region
        %s246 = ssub.s32 %s18, 1
        %p247 = scmp.lt.s32.totalorder %s23, 1
        %s248 = scalar_select %p247, %s23, 1
        %s249 = smul.addr %s248, 8
        %s250 = scalar_lea.vmem %s0, %s249
        %p251 = pneg %p44
        %p252 = pneg %p41
        %p253 = pneg %p65
        %p254 = pneg %p62
        %p255 = pneg %p86
        %p256 = pneg %p83
        %p257 = pneg %p107
        %p258 = pneg %p104
        %p259 = pneg %p128
        %p260 = pneg %p125
        %p261 = pneg %p149
        %p262 = pneg %p146
        %p263 = pneg %p170
        %p264 = pneg %p167
        %p265 = pneg %p196
        %p266 = pneg %p193
        %s267 = sand.u32 %s183, 1
        %s268 = scalar_lea.sflag [#allocation4], %s267
        %s269 = sand.u32 %s183, 1
        %s270 = scalar_lea.vmem [#allocation3], %s269
        %p271 = scmp.lt.s32.totalorder %s23, 1
        %s272 = scalar_select %p271, %s23, 1
        %s273 = smul.addr %s272, 8
        %s274 = scalar_lea.vmem %s0, %s273
        %v275 = vld [vmem:[%s274] sm:$0xff]
        %v276 = vld [vmem:[%s1] sm:$0xff]
        %v277 = vld [vmem:[%s1 + $0x8] sm:$0xff]
        %v278 = vld [vmem:[%s1 + $0x10] sm:$0xff]
        %v279 = vld [vmem:[%s1 + $0x18] sm:$0xff]
        %v280 = vld [vmem:[%s1 + $0x20] sm:$0xff]
        %v281 = vld [vmem:[%s1 + $0x28] sm:$0xff]
        %v282 = vld [vmem:[%s1 + $0x30] sm:$0xff]
        %v283 = vld [vmem:[%s1 + $0x38] sm:$0xff]
        %v284 = vld [vmem:[%s2] sm:$0xff]
        %v285 = vld [vmem:[%s2 + $0x8] sm:$0xff]
        %v286 = vld [vmem:[%s2 + $0x10] sm:$0xff]
        %v287 = vld [vmem:[%s2 + $0x18] sm:$0xff]
        %v288 = vld [vmem:[%s2 + $0x20] sm:$0xff]
        %v289 = vld [vmem:[%s2 + $0x28] sm:$0xff]
        %v290 = vld [vmem:[%s2 + $0x30] sm:$0xff]
        %v291 = vld [vmem:[%s2 + $0x38] sm:$0xff]
        %293 = vset.pattern.permute.xlu0 0
        %294 = vperm.xlu0 %293, %v284
        %v295 = vpop.permute.xlu0 %294
        %298 = vset.pattern.permute.xlu0 0
        %299 = vperm.xlu0 %298, %v285
        %v300 = vpop.permute.xlu0 %299
        %303 = vset.pattern.permute.xlu0 0
        %304 = vperm.xlu0 %303, %v286
        %v305 = vpop.permute.xlu0 %304
        %308 = vset.pattern.permute.xlu0 0
        %309 = vperm.xlu0 %308, %v287
        %v310 = vpop.permute.xlu0 %309
        %313 = vset.pattern.permute.xlu0 0
        %314 = vperm.xlu0 %313, %v288
        %v315 = vpop.permute.xlu0 %314
        %318 = vset.pattern.permute.xlu0 0
        %319 = vperm.xlu0 %318, %v289
        %v320 = vpop.permute.xlu0 %319
        %323 = vset.pattern.permute.xlu0 0
        %324 = vperm.xlu0 %323, %v290
        %v325 = vpop.permute.xlu0 %324
        %328 = vset.pattern.permute.xlu0 0
        %329 = vperm.xlu0 %328, %v291
        %v330 = vpop.permute.xlu0 %329
        %vm332 = vcmask 64512
        %v334 = vsel %vm332, %v276, 0
        %v337 = vsel %vm332, %v277, 0
        %v340 = vsel %vm332, %v278, 0
        %v343 = vsel %vm332, %v279, 0
        %v346 = vsel %vm332, %v280, 0
        %v349 = vsel %vm332, %v281, 0
        %v352 = vsel %vm332, %v282, 0
        %v355 = vsel %vm332, %v283, 0
        %357 = vmatpush.msra.mxu0 0.0
        %358 = vmatpush.msra.mxu0 0.0
        %359 = vmatpush.msra.mxu0 0.0
        %360 = vmatpush.msra.mxu0 0.0
        %361 = vmatpush.msra.mxu0 0.0
        %362 = vmatpush.msra.mxu0 0.0
        %363 = vmatpush.msra.mxu0 0.0
        %364 = vmatpush.msra.mxu0 0.0
        %365 = vmatpush.msra.mxu0 0.0
        %366 = vmatpush.msra.mxu0 0.0
        %367 = vmatpush.msra.mxu0 0.0
        %368 = vmatpush.msra.mxu0 0.0
        %369 = vmatpush.msra.mxu0 0.0
        %370 = vmatpush.msra.mxu0 0.0
        %371 = vmatpush.msra.mxu0 0.0
        %v372 = vand.u32 %v275, 4294901760
        %373 = vmatpush.msra.mxu0 %v372
        %v374 = vand.u32 %v334, 4294901760
        %v375 = vsub.f32 %v334, %v374
        %v376 = vand.u32 %v375, 4294901760
        %v377 = vsub.f32 %v375, %v376
        %v378 = vand.u32 %v377, 4294901760
        %379 = vmatmul.f32.gmra.mxu0 %v378
        %v380 = vpop.f32.mrf.mxu0
        %v381 = vadd.f32 %v295, %v380
        %v382 = vand.u32 %v337, 4294901760
        %v383 = vsub.f32 %v337, %v382
        %v384 = vand.u32 %v383, 4294901760
        %v385 = vsub.f32 %v383, %v384
        %v386 = vand.u32 %v385, 4294901760
        %387 = vmatmul.f32.gmra.mxu0 %v386
        %v388 = vpop.f32.mrf.mxu0
        %v389 = vadd.f32 %v300, %v388
        %v390 = vand.u32 %v340, 4294901760
        %v391 = vsub.f32 %v340, %v390
        %v392 = vand.u32 %v391, 4294901760
        %v393 = vsub.f32 %v391, %v392
        %v394 = vand.u32 %v393, 4294901760
        %395 = vmatmul.f32.gmra.mxu0 %v394
        %v396 = vpop.f32.mrf.mxu0
        %v397 = vadd.f32 %v305, %v396
        %v398 = vand.u32 %v343, 4294901760
        %v399 = vsub.f32 %v343, %v398
        %v400 = vand.u32 %v399, 4294901760
        %v401 = vsub.f32 %v399, %v400
        %v402 = vand.u32 %v401, 4294901760
        %403 = vmatmul.f32.gmra.mxu0 %v402
        %v404 = vpop.f32.mrf.mxu0
        %v405 = vadd.f32 %v310, %v404
        %v406 = vand.u32 %v346, 4294901760
        %v407 = vsub.f32 %v346, %v406
        %v408 = vand.u32 %v407, 4294901760
        %v409 = vsub.f32 %v407, %v408
        %v410 = vand.u32 %v409, 4294901760
        %411 = vmatmul.f32.gmra.mxu0 %v410
        %v412 = vpop.f32.mrf.mxu0
        %v413 = vadd.f32 %v315, %v412
        %v414 = vand.u32 %v349, 4294901760
        %v415 = vsub.f32 %v349, %v414
        %v416 = vand.u32 %v415, 4294901760
        %v417 = vsub.f32 %v415, %v416
        %v418 = vand.u32 %v417, 4294901760
        %419 = vmatmul.f32.gmra.mxu0 %v418
        %v420 = vpop.f32.mrf.mxu0
        %v421 = vadd.f32 %v320, %v420
        %v422 = vand.u32 %v352, 4294901760
        %v423 = vsub.f32 %v352, %v422
        %v424 = vand.u32 %v423, 4294901760
        %v425 = vsub.f32 %v423, %v424
        %v426 = vand.u32 %v425, 4294901760
        %427 = vmatmul.f32.gmra.mxu0 %v426
        %v428 = vpop.f32.mrf.mxu0
        %v429 = vadd.f32 %v325, %v428
        %v430 = vand.u32 %v355, 4294901760
        %v431 = vsub.f32 %v355, %v430
        %v432 = vand.u32 %v431, 4294901760
        %v433 = vsub.f32 %v431, %v432
        %v434 = vand.u32 %v433, 4294901760
        %435 = vmatmul.f32.gmra.mxu0 %v434
        %v436 = vpop.f32.mrf.mxu0
        %v437 = vadd.f32 %v330, %v436
        %438 = vdwg.mxu0
        %439 = vmatpush.msra.mxu0 0.0
        %440 = vmatpush.msra.mxu0 0.0
        %441 = vmatpush.msra.mxu0 0.0
        %442 = vmatpush.msra.mxu0 0.0
        %443 = vmatpush.msra.mxu0 0.0
        %444 = vmatpush.msra.mxu0 0.0
        %445 = vmatpush.msra.mxu0 0.0
        %446 = vmatpush.msra.mxu0 0.0
        %447 = vmatpush.msra.mxu0 0.0
        %448 = vmatpush.msra.mxu0 0.0
        %449 = vmatpush.msra.mxu0 0.0
        %450 = vmatpush.msra.mxu0 0.0
        %451 = vmatpush.msra.mxu0 0.0
        %452 = vmatpush.msra.mxu0 0.0
        %453 = vmatpush.msra.mxu0 0.0
        %v454 = vand.u32 %v275, 4294901760
        %v455 = vsub.f32 %v275, %v454
        %v456 = vand.u32 %v455, 4294901760
        %v457 = vsub.f32 %v455, %v456
        %v458 = vand.u32 %v457, 4294901760
        %459 = vmatpush.msra.mxu0 %v458
        %v460 = vand.u32 %v334, 4294901760
        %461 = vmatmul.f32.gmra.mxu0 %v460
        %v462 = vpop.f32.mrf.mxu0
        %v463 = vadd.f32 %v381, %v462
        %v464 = vand.u32 %v337, 4294901760
        %465 = vmatmul.f32.gmra.mxu0 %v464
        %v466 = vpop.f32.mrf.mxu0
        %v467 = vadd.f32 %v389, %v466
        %v468 = vand.u32 %v340, 4294901760
        %469 = vmatmul.f32.gmra.mxu0 %v468
        %v470 = vpop.f32.mrf.mxu0
        %v471 = vadd.f32 %v397, %v470
        %v472 = vand.u32 %v343, 4294901760
        %473 = vmatmul.f32.gmra.mxu0 %v472
        %v474 = vpop.f32.mrf.mxu0
        %v475 = vadd.f32 %v405, %v474
        %v476 = vand.u32 %v346, 4294901760
        %477 = vmatmul.f32.gmra.mxu0 %v476
        %v478 = vpop.f32.mrf.mxu0
        %v479 = vadd.f32 %v413, %v478
        %v480 = vand.u32 %v349, 4294901760
        %481 = vmatmul.f32.gmra.mxu0 %v480
        %v482 = vpop.f32.mrf.mxu0
        %v483 = vadd.f32 %v421, %v482
        %v484 = vand.u32 %v352, 4294901760
        %485 = vmatmul.f32.gmra.mxu0 %v484
        %v486 = vpop.f32.mrf.mxu0
        %v487 = vadd.f32 %v429, %v486
        %v488 = vand.u32 %v355, 4294901760
        %489 = vmatmul.f32.gmra.mxu0 %v488
        %v490 = vpop.f32.mrf.mxu0
        %v491 = vadd.f32 %v437, %v490
        %492 = vdwg.mxu0
        %493 = vmatpush.msra.mxu0 0.0
        %494 = vmatpush.msra.mxu0 0.0
        %495 = vmatpush.msra.mxu0 0.0
        %496 = vmatpush.msra.mxu0 0.0
        %497 = vmatpush.msra.mxu0 0.0
        %498 = vmatpush.msra.mxu0 0.0
        %499 = vmatpush.msra.mxu0 0.0
        %500 = vmatpush.msra.mxu0 0.0
        %501 = vmatpush.msra.mxu0 0.0
        %502 = vmatpush.msra.mxu0 0.0
        %503 = vmatpush.msra.mxu0 0.0
        %504 = vmatpush.msra.mxu0 0.0
        %505 = vmatpush.msra.mxu0 0.0
        %506 = vmatpush.msra.mxu0 0.0
        %507 = vmatpush.msra.mxu0 0.0
        %v508 = vand.u32 %v275, 4294901760
        %v509 = vsub.f32 %v275, %v508
        %510 = vmatpush.msra.mxu0 %v509
        %v511 = vand.u32 %v334, 4294901760
        %v512 = vsub.f32 %v334, %v511
        %513 = vmatmul.f32.gmra.mxu0 %v512
        %v514 = vpop.f32.mrf.mxu0
        %v515 = vadd.f32 %v463, %v514
        %v516 = vand.u32 %v337, 4294901760
        %v517 = vsub.f32 %v337, %v516
        %518 = vmatmul.f32.gmra.mxu0 %v517
        %v519 = vpop.f32.mrf.mxu0
        %v520 = vadd.f32 %v467, %v519
        %v521 = vand.u32 %v340, 4294901760
        %v522 = vsub.f32 %v340, %v521
        %523 = vmatmul.f32.gmra.mxu0 %v522
        %v524 = vpop.f32.mrf.mxu0
        %v525 = vadd.f32 %v471, %v524
        %v526 = vand.u32 %v343, 4294901760
        %v527 = vsub.f32 %v343, %v526
        %528 = vmatmul.f32.gmra.mxu0 %v527
        %v529 = vpop.f32.mrf.mxu0
        %v530 = vadd.f32 %v475, %v529
        %v531 = vand.u32 %v346, 4294901760
        %v532 = vsub.f32 %v346, %v531
        %533 = vmatmul.f32.gmra.mxu0 %v532
        %v534 = vpop.f32.mrf.mxu0
        %v535 = vadd.f32 %v479, %v534
        %v536 = vand.u32 %v349, 4294901760
        %v537 = vsub.f32 %v349, %v536
        %538 = vmatmul.f32.gmra.mxu0 %v537
        %v539 = vpop.f32.mrf.mxu0
        %v540 = vadd.f32 %v483, %v539
        %v541 = vand.u32 %v352, 4294901760
        %v542 = vsub.f32 %v352, %v541
        %543 = vmatmul.f32.gmra.mxu0 %v542
        %v544 = vpop.f32.mrf.mxu0
        %v545 = vadd.f32 %v487, %v544
        %v546 = vand.u32 %v355, 4294901760
        %v547 = vsub.f32 %v355, %v546
        %548 = vmatmul.f32.gmra.mxu0 %v547
        %v549 = vpop.f32.mrf.mxu0
        %v550 = vadd.f32 %v491, %v549
        %551 = vdwg.mxu0
        %552 = vmatpush.msra.mxu0 0.0
        %553 = vmatpush.msra.mxu0 0.0
        %554 = vmatpush.msra.mxu0 0.0
        %555 = vmatpush.msra.mxu0 0.0
        %556 = vmatpush.msra.mxu0 0.0
        %557 = vmatpush.msra.mxu0 0.0
        %558 = vmatpush.msra.mxu0 0.0
        %559 = vmatpush.msra.mxu0 0.0
        %560 = vmatpush.msra.mxu0 0.0
        %561 = vmatpush.msra.mxu0 0.0
        %562 = vmatpush.msra.mxu0 0.0
        %563 = vmatpush.msra.mxu0 0.0
        %564 = vmatpush.msra.mxu0 0.0
        %565 = vmatpush.msra.mxu0 0.0
        %566 = vmatpush.msra.mxu0 0.0
        %v567 = vand.u32 %v275, 4294901760
        %568 = vmatpush.msra.mxu0 %v567
        %v569 = vand.u32 %v334, 4294901760
        %v570 = vsub.f32 %v334, %v569
        %v571 = vand.u32 %v570, 4294901760
        %572 = vmatmul.f32.gmra.mxu0 %v571
        %v573 = vpop.f32.mrf.mxu0
        %v574 = vadd.f32 %v515, %v573
        %v575 = vand.u32 %v337, 4294901760
        %v576 = vsub.f32 %v337, %v575
        %v577 = vand.u32 %v576, 4294901760
        %578 = vmatmul.f32.gmra.mxu0 %v577
        %v579 = vpop.f32.mrf.mxu0
        %v580 = vadd.f32 %v520, %v579
        %v581 = vand.u32 %v340, 4294901760
        %v582 = vsub.f32 %v340, %v581
        %v583 = vand.u32 %v582, 4294901760
        %584 = vmatmul.f32.gmra.mxu0 %v583
        %v585 = vpop.f32.mrf.mxu0
        %v586 = vadd.f32 %v525, %v585
        %v587 = vand.u32 %v343, 4294901760
        %v588 = vsub.f32 %v343, %v587
        %v589 = vand.u32 %v588, 4294901760
        %590 = vmatmul.f32.gmra.mxu0 %v589
        %v591 = vpop.f32.mrf.mxu0
        %v592 = vadd.f32 %v530, %v591
        %v593 = vand.u32 %v346, 4294901760
        %v594 = vsub.f32 %v346, %v593
        %v595 = vand.u32 %v594, 4294901760
        %596 = vmatmul.f32.gmra.mxu0 %v595
        %v597 = vpop.f32.mrf.mxu0
        %v598 = vadd.f32 %v535, %v597
        %v599 = vand.u32 %v349, 4294901760
        %v600 = vsub.f32 %v349, %v599
        %v601 = vand.u32 %v600, 4294901760
        %602 = vmatmul.f32.gmra.mxu0 %v601
        %v603 = vpop.f32.mrf.mxu0
        %v604 = vadd.f32 %v540, %v603
        %v605 = vand.u32 %v352, 4294901760
        %v606 = vsub.f32 %v352, %v605
        %v607 = vand.u32 %v606, 4294901760
        %608 = vmatmul.f32.gmra.mxu0 %v607
        %v609 = vpop.f32.mrf.mxu0
        %v610 = vadd.f32 %v545, %v609
        %v611 = vand.u32 %v355, 4294901760
        %v612 = vsub.f32 %v355, %v611
        %v613 = vand.u32 %v612, 4294901760
        %614 = vmatmul.f32.gmra.mxu0 %v613
        %v615 = vpop.f32.mrf.mxu0
        %v616 = vadd.f32 %v550, %v615
        %617 = vdwg.mxu0
        %618 = vmatpush.msra.mxu0 0.0
        %619 = vmatpush.msra.mxu0 0.0
        %620 = vmatpush.msra.mxu0 0.0
        %621 = vmatpush.msra.mxu0 0.0
        %622 = vmatpush.msra.mxu0 0.0
        %623 = vmatpush.msra.mxu0 0.0
        %624 = vmatpush.msra.mxu0 0.0
        %625 = vmatpush.msra.mxu0 0.0
        %626 = vmatpush.msra.mxu0 0.0
        %627 = vmatpush.msra.mxu0 0.0
        %628 = vmatpush.msra.mxu0 0.0
        %629 = vmatpush.msra.mxu0 0.0
        %630 = vmatpush.msra.mxu0 0.0
        %631 = vmatpush.msra.mxu0 0.0
        %632 = vmatpush.msra.mxu0 0.0
        %v633 = vand.u32 %v275, 4294901760
        %v634 = vsub.f32 %v275, %v633
        %v635 = vand.u32 %v634, 4294901760
        %636 = vmatpush.msra.mxu0 %v635
        %v637 = vand.u32 %v334, 4294901760
        %638 = vmatmul.f32.gmra.mxu0 %v637
        %v639 = vpop.f32.mrf.mxu0
        %v640 = vadd.f32 %v574, %v639
        %v641 = vand.u32 %v337, 4294901760
        %642 = vmatmul.f32.gmra.mxu0 %v641
        %v643 = vpop.f32.mrf.mxu0
        %v644 = vadd.f32 %v580, %v643
        %v645 = vand.u32 %v340, 4294901760
        %646 = vmatmul.f32.gmra.mxu0 %v645
        %v647 = vpop.f32.mrf.mxu0
        %v648 = vadd.f32 %v586, %v647
        %v649 = vand.u32 %v343, 4294901760
        %650 = vmatmul.f32.gmra.mxu0 %v649
        %v651 = vpop.f32.mrf.mxu0
        %v652 = vadd.f32 %v592, %v651
        %v653 = vand.u32 %v346, 4294901760
        %654 = vmatmul.f32.gmra.mxu0 %v653
        %v655 = vpop.f32.mrf.mxu0
        %v656 = vadd.f32 %v598, %v655
        %v657 = vand.u32 %v349, 4294901760
        %658 = vmatmul.f32.gmra.mxu0 %v657
        %v659 = vpop.f32.mrf.mxu0
        %v660 = vadd.f32 %v604, %v659
        %v661 = vand.u32 %v352, 4294901760
        %662 = vmatmul.f32.gmra.mxu0 %v661
        %v663 = vpop.f32.mrf.mxu0
        %v664 = vadd.f32 %v610, %v663
        %v665 = vand.u32 %v355, 4294901760
        %666 = vmatmul.f32.gmra.mxu0 %v665
        %v667 = vpop.f32.mrf.mxu0
        %v668 = vadd.f32 %v616, %v667
        %669 = vdwg.mxu0
        %670 = vmatpush.msra.mxu0 0.0
        %671 = vmatpush.msra.mxu0 0.0
        %672 = vmatpush.msra.mxu0 0.0
        %673 = vmatpush.msra.mxu0 0.0
        %674 = vmatpush.msra.mxu0 0.0
        %675 = vmatpush.msra.mxu0 0.0
        %676 = vmatpush.msra.mxu0 0.0
        %677 = vmatpush.msra.mxu0 0.0
        %678 = vmatpush.msra.mxu0 0.0
        %679 = vmatpush.msra.mxu0 0.0
        %680 = vmatpush.msra.mxu0 0.0
        %681 = vmatpush.msra.mxu0 0.0
        %682 = vmatpush.msra.mxu0 0.0
        %683 = vmatpush.msra.mxu0 0.0
        %684 = vmatpush.msra.mxu0 0.0
        %v685 = vand.u32 %v275, 4294901760
        %686 = vmatpush.msra.mxu0 %v685
        %v687 = vand.u32 %v334, 4294901760
        %688 = vmatmul.f32.gmra.mxu0 %v687
        %v689 = vpop.f32.mrf.mxu0
        %v690 = vadd.f32 %v640, %v689
        %v691 = vand.u32 %v337, 4294901760
        %692 = vmatmul.f32.gmra.mxu0 %v691
        %v693 = vpop.f32.mrf.mxu0
        %v694 = vadd.f32 %v644, %v693
        %v695 = vand.u32 %v340, 4294901760
        %696 = vmatmul.f32.gmra.mxu0 %v695
        %v697 = vpop.f32.mrf.mxu0
        %v698 = vadd.f32 %v648, %v697
        %v699 = vand.u32 %v343, 4294901760
        %700 = vmatmul.f32.gmra.mxu0 %v699
        %v701 = vpop.f32.mrf.mxu0
        %v702 = vadd.f32 %v652, %v701
        %v703 = vand.u32 %v346, 4294901760
        %704 = vmatmul.f32.gmra.mxu0 %v703
        %v705 = vpop.f32.mrf.mxu0
        %v706 = vadd.f32 %v656, %v705
        %v707 = vand.u32 %v349, 4294901760
        %708 = vmatmul.f32.gmra.mxu0 %v707
        %v709 = vpop.f32.mrf.mxu0
        %v710 = vadd.f32 %v660, %v709
        %v711 = vand.u32 %v352, 4294901760
        %712 = vmatmul.f32.gmra.mxu0 %v711
        %v713 = vpop.f32.mrf.mxu0
        %v714 = vadd.f32 %v664, %v713
        %v715 = vand.u32 %v355, 4294901760
        %716 = vmatmul.f32.gmra.mxu0 %v715
        %v717 = vpop.f32.mrf.mxu0
        %v718 = vadd.f32 %v668, %v717
        %719 = vdwg.mxu0
        %v720 = vmax.f32 %v690, 0.0
        %v721 = vmax.f32 %v694, 0.0
        %v722 = vmax.f32 %v698, 0.0
        %v723 = vmax.f32 %v702, 0.0
        %v724 = vmax.f32 %v706, 0.0
        %v725 = vmax.f32 %v710, 0.0
        %v726 = vmax.f32 %v714, 0.0
        %v727 = vmax.f32 %v718, 0.0
        %v728 = vld [vmem:[%s3] sm:$0xff]
        %v729 = vld [vmem:[%s3 + $0x8] sm:$0xff]
        %v730 = vld [vmem:[%s3 + $0x10] sm:$0xff]
        %v731 = vld [vmem:[%s3 + $0x18] sm:$0xff]
        %v732 = vld [vmem:[%s3 + $0x20] sm:$0xff]
        %v733 = vld [vmem:[%s3 + $0x28] sm:$0xff]
        %v734 = vld [vmem:[%s3 + $0x30] sm:$0xff]
        %v735 = vld [vmem:[%s3 + $0x38] sm:$0xff]
        %v736 = vld [vmem:[%s4] sm:$0xff]
        %v737 = vld [vmem:[%s4 + $0x8] sm:$0xff]
        %v738 = vld [vmem:[%s4 + $0x10] sm:$0xff]
        %v739 = vld [vmem:[%s4 + $0x18] sm:$0xff]
        %v740 = vld [vmem:[%s4 + $0x20] sm:$0xff]
        %v741 = vld [vmem:[%s4 + $0x28] sm:$0xff]
        %v742 = vld [vmem:[%s4 + $0x30] sm:$0xff]
        %v743 = vld [vmem:[%s4 + $0x38] sm:$0xff]
        %745 = vset.pattern.permute.xlu0 0
        %746 = vperm.xlu0 %745, %v736
        %v747 = vpop.permute.xlu0 %746
        %750 = vset.pattern.permute.xlu0 0
        %751 = vperm.xlu0 %750, %v737
        %v752 = vpop.permute.xlu0 %751
        %755 = vset.pattern.permute.xlu0 0
        %756 = vperm.xlu0 %755, %v738
        %v757 = vpop.permute.xlu0 %756
        %760 = vset.pattern.permute.xlu0 0
        %761 = vperm.xlu0 %760, %v739
        %v762 = vpop.permute.xlu0 %761
        %765 = vset.pattern.permute.xlu0 0
        %766 = vperm.xlu0 %765, %v740
        %v767 = vpop.permute.xlu0 %766
        %770 = vset.pattern.permute.xlu0 0
        %771 = vperm.xlu0 %770, %v741
        %v772 = vpop.permute.xlu0 %771
        %775 = vset.pattern.permute.xlu0 0
        %776 = vperm.xlu0 %775, %v742
        %v777 = vpop.permute.xlu0 %776
        %780 = vset.pattern.permute.xlu0 0
        %781 = vperm.xlu0 %780, %v743
        %v782 = vpop.permute.xlu0 %781
        %vm784 = vcmask 523264
        %v786 = vsel %vm784, %v728, 0
        %v789 = vsel %vm784, %v729, 0
        %v792 = vsel %vm784, %v730, 0
        %v795 = vsel %vm784, %v731, 0
        %v798 = vsel %vm784, %v732, 0
        %v801 = vsel %vm784, %v733, 0
        %v804 = vsel %vm784, %v734, 0
        %v807 = vsel %vm784, %v735, 0
        %809 = vmatpush.msra.mxu0 0.0
        %810 = vmatpush.msra.mxu0 0.0
        %811 = vmatpush.msra.mxu0 0.0
        %812 = vmatpush.msra.mxu0 0.0
        %813 = vmatpush.msra.mxu0 0.0
        %814 = vmatpush.msra.mxu0 0.0
        %815 = vmatpush.msra.mxu0 0.0
        %816 = vmatpush.msra.mxu0 0.0
        %v817 = vand.u32 %v727, 4294901760
        %818 = vmatpush.msra.mxu0 %v817
        %v819 = vand.u32 %v726, 4294901760
        %820 = vmatpush.msra.mxu0 %v819
        %v821 = vand.u32 %v725, 4294901760
        %822 = vmatpush.msra.mxu0 %v821
        %v823 = vand.u32 %v724, 4294901760
        %824 = vmatpush.msra.mxu0 %v823
        %v825 = vand.u32 %v723, 4294901760
        %826 = vmatpush.msra.mxu0 %v825
        %v827 = vand.u32 %v722, 4294901760
        %828 = vmatpush.msra.mxu0 %v827
        %v829 = vand.u32 %v721, 4294901760
        %830 = vmatpush.msra.mxu0 %v829
        %v831 = vand.u32 %v720, 4294901760
        %832 = vmatpush.msra.mxu0 %v831
        %v833 = vand.u32 %v786, 4294901760
        %v834 = vsub.f32 %v786, %v833
        %v835 = vand.u32 %v834, 4294901760
        %v836 = vsub.f32 %v834, %v835
        %v837 = vand.u32 %v836, 4294901760
        %838 = vmatmul.f32.gmra.mxu0 %v837
        %v839 = vpop.f32.mrf.mxu0
        %v840 = vadd.f32 %v747, %v839
        %v841 = vand.u32 %v789, 4294901760
        %v842 = vsub.f32 %v789, %v841
        %v843 = vand.u32 %v842, 4294901760
        %v844 = vsub.f32 %v842, %v843
        %v845 = vand.u32 %v844, 4294901760
        %846 = vmatmul.f32.gmra.mxu0 %v845
        %v847 = vpop.f32.mrf.mxu0
        %v848 = vadd.f32 %v752, %v847
        %v849 = vand.u32 %v792, 4294901760
        %v850 = vsub.f32 %v792, %v849
        %v851 = vand.u32 %v850, 4294901760
        %v852 = vsub.f32 %v850, %v851
        %v853 = vand.u32 %v852, 4294901760
        %854 = vmatmul.f32.gmra.mxu0 %v853
        %v855 = vpop.f32.mrf.mxu0
        %v856 = vadd.f32 %v757, %v855
        %v857 = vand.u32 %v795, 4294901760
        %v858 = vsub.f32 %v795, %v857
        %v859 = vand.u32 %v858, 4294901760
        %v860 = vsub.f32 %v858, %v859
        %v861 = vand.u32 %v860, 4294901760
        %862 = vmatmul.f32.gmra.mxu0 %v861
        %v863 = vpop.f32.mrf.mxu0
        %v864 = vadd.f32 %v762, %v863
        %v865 = vand.u32 %v798, 4294901760
        %v866 = vsub.f32 %v798, %v865
        %v867 = vand.u32 %v866, 4294901760
        %v868 = vsub.f32 %v866, %v867
        %v869 = vand.u32 %v868, 4294901760
        %870 = vmatmul.f32.gmra.mxu0 %v869
        %v871 = vpop.f32.mrf.mxu0
        %v872 = vadd.f32 %v767, %v871
        %v873 = vand.u32 %v801, 4294901760
        %v874 = vsub.f32 %v801, %v873
        %v875 = vand.u32 %v874, 4294901760
        %v876 = vsub.f32 %v874, %v875
        %v877 = vand.u32 %v876, 4294901760
        %878 = vmatmul.f32.gmra.mxu0 %v877
        %v879 = vpop.f32.mrf.mxu0
        %v880 = vadd.f32 %v772, %v879
        %v881 = vand.u32 %v804, 4294901760
        %v882 = vsub.f32 %v804, %v881
        %v883 = vand.u32 %v882, 4294901760
        %v884 = vsub.f32 %v882, %v883
        %v885 = vand.u32 %v884, 4294901760
        %886 = vmatmul.f32.gmra.mxu0 %v885
        %v887 = vpop.f32.mrf.mxu0
        %v888 = vadd.f32 %v777, %v887
        %v889 = vand.u32 %v807, 4294901760
        %v890 = vsub.f32 %v807, %v889
        %v891 = vand.u32 %v890, 4294901760
        %v892 = vsub.f32 %v890, %v891
        %v893 = vand.u32 %v892, 4294901760
        %894 = vmatmul.f32.gmra.mxu0 %v893
        %v895 = vpop.f32.mrf.mxu0
        %v896 = vadd.f32 %v782, %v895
        %897 = vdwg.mxu0
        %898 = vmatpush.msra.mxu0 0.0
        %899 = vmatpush.msra.mxu0 0.0
        %900 = vmatpush.msra.mxu0 0.0
        %901 = vmatpush.msra.mxu0 0.0
        %902 = vmatpush.msra.mxu0 0.0
        %903 = vmatpush.msra.mxu0 0.0
        %904 = vmatpush.msra.mxu0 0.0
        %905 = vmatpush.msra.mxu0 0.0
        %v906 = vand.u32 %v727, 4294901760
        %v907 = vsub.f32 %v727, %v906
        %v908 = vand.u32 %v907, 4294901760
        %v909 = vsub.f32 %v907, %v908
        %v910 = vand.u32 %v909, 4294901760
        %911 = vmatpush.msra.mxu0 %v910
        %v912 = vand.u32 %v726, 4294901760
        %v913 = vsub.f32 %v726, %v912
        %v914 = vand.u32 %v913, 4294901760
        %v915 = vsub.f32 %v913, %v914
        %v916 = vand.u32 %v915, 4294901760
        %917 = vmatpush.msra.mxu0 %v916
        %v918 = vand.u32 %v725, 4294901760
        %v919 = vsub.f32 %v725, %v918
        %v920 = vand.u32 %v919, 4294901760
        %v921 = vsub.f32 %v919, %v920
        %v922 = vand.u32 %v921, 4294901760
        %923 = vmatpush.msra.mxu0 %v922
        %v924 = vand.u32 %v724, 4294901760
        %v925 = vsub.f32 %v724, %v924
        %v926 = vand.u32 %v925, 4294901760
        %v927 = vsub.f32 %v925, %v926
        %v928 = vand.u32 %v927, 4294901760
        %929 = vmatpush.msra.mxu0 %v928
        %v930 = vand.u32 %v723, 4294901760
        %v931 = vsub.f32 %v723, %v930
        %v932 = vand.u32 %v931, 4294901760
        %v933 = vsub.f32 %v931, %v932
        %v934 = vand.u32 %v933, 4294901760
        %935 = vmatpush.msra.mxu0 %v934
        %v936 = vand.u32 %v722, 4294901760
        %v937 = vsub.f32 %v722, %v936
        %v938 = vand.u32 %v937, 4294901760
        %v939 = vsub.f32 %v937, %v938
        %v940 = vand.u32 %v939, 4294901760
        %941 = vmatpush.msra.mxu0 %v940
        %v942 = vand.u32 %v721, 4294901760
        %v943 = vsub.f32 %v721, %v942
        %v944 = vand.u32 %v943, 4294901760
        %v945 = vsub.f32 %v943, %v944
        %v946 = vand.u32 %v945, 4294901760
        %947 = vmatpush.msra.mxu0 %v946
        %v948 = vand.u32 %v720, 4294901760
        %v949 = vsub.f32 %v720, %v948
        %v950 = vand.u32 %v949, 4294901760
        %v951 = vsub.f32 %v949, %v950
        %v952 = vand.u32 %v951, 4294901760
        %953 = vmatpush.msra.mxu0 %v952
        %v954 = vand.u32 %v786, 4294901760
        %955 = vmatmul.f32.gmra.mxu0 %v954
        %v956 = vpop.f32.mrf.mxu0
        %v957 = vadd.f32 %v840, %v956
        %v958 = vand.u32 %v789, 4294901760
        %959 = vmatmul.f32.gmra.mxu0 %v958
        %v960 = vpop.f32.mrf.mxu0
        %v961 = vadd.f32 %v848, %v960
        %v962 = vand.u32 %v792, 4294901760
        %963 = vmatmul.f32.gmra.mxu0 %v962
        %v964 = vpop.f32.mrf.mxu0
        %v965 = vadd.f32 %v856, %v964
        %v966 = vand.u32 %v795, 4294901760
        %967 = vmatmul.f32.gmra.mxu0 %v966
        %v968 = vpop.f32.mrf.mxu0
        %v969 = vadd.f32 %v864, %v968
        %v970 = vand.u32 %v798, 4294901760
        %971 = vmatmul.f32.gmra.mxu0 %v970
        %v972 = vpop.f32.mrf.mxu0
        %v973 = vadd.f32 %v872, %v972
        %v974 = vand.u32 %v801, 4294901760
        %975 = vmatmul.f32.gmra.mxu0 %v974
        %v976 = vpop.f32.mrf.mxu0
        %v977 = vadd.f32 %v880, %v976
        %v978 = vand.u32 %v804, 4294901760
        %979 = vmatmul.f32.gmra.mxu0 %v978
        %v980 = vpop.f32.mrf.mxu0
        %v981 = vadd.f32 %v888, %v980
        %v982 = vand.u32 %v807, 4294901760
        %983 = vmatmul.f32.gmra.mxu0 %v982
        %v984 = vpop.f32.mrf.mxu0
        %v985 = vadd.f32 %v896, %v984
        %986 = vdwg.mxu0
        %987 = vmatpush.msra.mxu0 0.0
        %988 = vmatpush.msra.mxu0 0.0
        %989 = vmatpush.msra.mxu0 0.0
        %990 = vmatpush.msra.mxu0 0.0
        %991 = vmatpush.msra.mxu0 0.0
        %992 = vmatpush.msra.mxu0 0.0
        %993 = vmatpush.msra.mxu0 0.0
        %994 = vmatpush.msra.mxu0 0.0
        %v995 = vand.u32 %v727, 4294901760
        %v996 = vsub.f32 %v727, %v995
        %997 = vmatpush.msra.mxu0 %v996
        %v998 = vand.u32 %v726, 4294901760
        %v999 = vsub.f32 %v726, %v998
        %1000 = vmatpush.msra.mxu0 %v999
        %v1001 = vand.u32 %v725, 4294901760
        %v1002 = vsub.f32 %v725, %v1001
        %1003 = vmatpush.msra.mxu0 %v1002
        %v1004 = vand.u32 %v724, 4294901760
        %v1005 = vsub.f32 %v724, %v1004
        %1006 = vmatpush.msra.mxu0 %v1005
        %v1007 = vand.u32 %v723, 4294901760
        %v1008 = vsub.f32 %v723, %v1007
        %1009 = vmatpush.msra.mxu0 %v1008
        %v1010 = vand.u32 %v722, 4294901760
        %v1011 = vsub.f32 %v722, %v1010
        %1012 = vmatpush.msra.mxu0 %v1011
        %v1013 = vand.u32 %v721, 4294901760
        %v1014 = vsub.f32 %v721, %v1013
        %1015 = vmatpush.msra.mxu0 %v1014
        %v1016 = vand.u32 %v720, 4294901760
        %v1017 = vsub.f32 %v720, %v1016
        %1018 = vmatpush.msra.mxu0 %v1017
        %v1019 = vand.u32 %v786, 4294901760
        %v1020 = vsub.f32 %v786, %v1019
        %1021 = vmatmul.f32.gmra.mxu0 %v1020
        %v1022 = vpop.f32.mrf.mxu0
        %v1023 = vadd.f32 %v957, %v1022
        %v1024 = vand.u32 %v789, 4294901760
        %v1025 = vsub.f32 %v789, %v1024
        %1026 = vmatmul.f32.gmra.mxu0 %v1025
        %v1027 = vpop.f32.mrf.mxu0
        %v1028 = vadd.f32 %v961, %v1027
        %v1029 = vand.u32 %v792, 4294901760
        %v1030 = vsub.f32 %v792, %v1029
        %1031 = vmatmul.f32.gmra.mxu0 %v1030
        %v1032 = vpop.f32.mrf.mxu0
        %v1033 = vadd.f32 %v965, %v1032
        %v1034 = vand.u32 %v795, 4294901760
        %v1035 = vsub.f32 %v795, %v1034
        %1036 = vmatmul.f32.gmra.mxu0 %v1035
        %v1037 = vpop.f32.mrf.mxu0
        %v1038 = vadd.f32 %v969, %v1037
        %v1039 = vand.u32 %v798, 4294901760
        %v1040 = vsub.f32 %v798, %v1039
        %1041 = vmatmul.f32.gmra.mxu0 %v1040
        %v1042 = vpop.f32.mrf.mxu0
        %v1043 = vadd.f32 %v973, %v1042
        %v1044 = vand.u32 %v801, 4294901760
        %v1045 = vsub.f32 %v801, %v1044
        %1046 = vmatmul.f32.gmra.mxu0 %v1045
        %v1047 = vpop.f32.mrf.mxu0
        %v1048 = vadd.f32 %v977, %v1047
        %v1049 = vand.u32 %v804, 4294901760
        %v1050 = vsub.f32 %v804, %v1049
        %1051 = vmatmul.f32.gmra.mxu0 %v1050
        %v1052 = vpop.f32.mrf.mxu0
        %v1053 = vadd.f32 %v981, %v1052
        %v1054 = vand.u32 %v807, 4294901760
        %v1055 = vsub.f32 %v807, %v1054
        %1056 = vmatmul.f32.gmra.mxu0 %v1055
        %v1057 = vpop.f32.mrf.mxu0
        %v1058 = vadd.f32 %v985, %v1057
        %1059 = vdwg.mxu0
        %1060 = vmatpush.msra.mxu0 0.0
        %1061 = vmatpush.msra.mxu0 0.0
        %1062 = vmatpush.msra.mxu0 0.0
        %1063 = vmatpush.msra.mxu0 0.0
        %1064 = vmatpush.msra.mxu0 0.0
        %1065 = vmatpush.msra.mxu0 0.0
        %1066 = vmatpush.msra.mxu0 0.0
        %1067 = vmatpush.msra.mxu0 0.0
        %v1068 = vand.u32 %v727, 4294901760
        %1069 = vmatpush.msra.mxu0 %v1068
        %v1070 = vand.u32 %v726, 4294901760
        %1071 = vmatpush.msra.mxu0 %v1070
        %v1072 = vand.u32 %v725, 4294901760
        %1073 = vmatpush.msra.mxu0 %v1072
        %v1074 = vand.u32 %v724, 4294901760
        %1075 = vmatpush.msra.mxu0 %v1074
        %v1076 = vand.u32 %v723, 4294901760
        %1077 = vmatpush.msra.mxu0 %v1076
        %v1078 = vand.u32 %v722, 4294901760
        %1079 = vmatpush.msra.mxu0 %v1078
        %v1080 = vand.u32 %v721, 4294901760
        %1081 = vmatpush.msra.mxu0 %v1080
        %v1082 = vand.u32 %v720, 4294901760
        %1083 = vmatpush.msra.mxu0 %v1082
        %v1084 = vand.u32 %v786, 4294901760
        %v1085 = vsub.f32 %v786, %v1084
        %v1086 = vand.u32 %v1085, 4294901760
        %1087 = vmatmul.f32.gmra.mxu0 %v1086
        %v1088 = vpop.f32.mrf.mxu0
        %v1089 = vadd.f32 %v1023, %v1088
        %v1090 = vand.u32 %v789, 4294901760
        %v1091 = vsub.f32 %v789, %v1090
        %v1092 = vand.u32 %v1091, 4294901760
        %1093 = vmatmul.f32.gmra.mxu0 %v1092
        %v1094 = vpop.f32.mrf.mxu0
        %v1095 = vadd.f32 %v1028, %v1094
        %v1096 = vand.u32 %v792, 4294901760
        %v1097 = vsub.f32 %v792, %v1096
        %v1098 = vand.u32 %v1097, 4294901760
        %1099 = vmatmul.f32.gmra.mxu0 %v1098
        %v1100 = vpop.f32.mrf.mxu0
        %v1101 = vadd.f32 %v1033, %v1100
        %v1102 = vand.u32 %v795, 4294901760
        %v1103 = vsub.f32 %v795, %v1102
        %v1104 = vand.u32 %v1103, 4294901760
        %1105 = vmatmul.f32.gmra.mxu0 %v1104
        %v1106 = vpop.f32.mrf.mxu0
        %v1107 = vadd.f32 %v1038, %v1106
        %v1108 = vand.u32 %v798, 4294901760
        %v1109 = vsub.f32 %v798, %v1108
        %v1110 = vand.u32 %v1109, 4294901760
        %1111 = vmatmul.f32.gmra.mxu0 %v1110
        %v1112 = vpop.f32.mrf.mxu0
        %v1113 = vadd.f32 %v1043, %v1112
        %v1114 = vand.u32 %v801, 4294901760
        %v1115 = vsub.f32 %v801, %v1114
        %v1116 = vand.u32 %v1115, 4294901760
        %1117 = vmatmul.f32.gmra.mxu0 %v1116
        %v1118 = vpop.f32.mrf.mxu0
        %v1119 = vadd.f32 %v1048, %v1118
        %v1120 = vand.u32 %v804, 4294901760
        %v1121 = vsub.f32 %v804, %v1120
        %v1122 = vand.u32 %v1121, 4294901760
        %1123 = vmatmul.f32.gmra.mxu0 %v1122
        %v1124 = vpop.f32.mrf.mxu0
        %v1125 = vadd.f32 %v1053, %v1124
        %v1126 = vand.u32 %v807, 4294901760
        %v1127 = vsub.f32 %v807, %v1126
        %v1128 = vand.u32 %v1127, 4294901760
        %1129 = vmatmul.f32.gmra.mxu0 %v1128
        %v1130 = vpop.f32.mrf.mxu0
        %v1131 = vadd.f32 %v1058, %v1130
        %1132 = vdwg.mxu0
        %1133 = vmatpush.msra.mxu0 0.0
        %1134 = vmatpush.msra.mxu0 0.0
        %1135 = vmatpush.msra.mxu0 0.0
        %1136 = vmatpush.msra.mxu0 0.0
        %1137 = vmatpush.msra.mxu0 0.0
        %1138 = vmatpush.msra.mxu0 0.0
        %1139 = vmatpush.msra.mxu0 0.0
        %1140 = vmatpush.msra.mxu0 0.0
        %v1141 = vand.u32 %v727, 4294901760
        %v1142 = vsub.f32 %v727, %v1141
        %v1143 = vand.u32 %v1142, 4294901760
        %1144 = vmatpush.msra.mxu0 %v1143
        %v1145 = vand.u32 %v726, 4294901760
        %v1146 = vsub.f32 %v726, %v1145
        %v1147 = vand.u32 %v1146, 4294901760
        %1148 = vmatpush.msra.mxu0 %v1147
        %v1149 = vand.u32 %v725, 4294901760
        %v1150 = vsub.f32 %v725, %v1149
        %v1151 = vand.u32 %v1150, 4294901760
        %1152 = vmatpush.msra.mxu0 %v1151
        %v1153 = vand.u32 %v724, 4294901760
        %v1154 = vsub.f32 %v724, %v1153
        %v1155 = vand.u32 %v1154, 4294901760
        %1156 = vmatpush.msra.mxu0 %v1155
        %v1157 = vand.u32 %v723, 4294901760
        %v1158 = vsub.f32 %v723, %v1157
        %v1159 = vand.u32 %v1158, 4294901760
        %1160 = vmatpush.msra.mxu0 %v1159
        %v1161 = vand.u32 %v722, 4294901760
        %v1162 = vsub.f32 %v722, %v1161
        %v1163 = vand.u32 %v1162, 4294901760
        %1164 = vmatpush.msra.mxu0 %v1163
        %v1165 = vand.u32 %v721, 4294901760
        %v1166 = vsub.f32 %v721, %v1165
        %v1167 = vand.u32 %v1166, 4294901760
        %1168 = vmatpush.msra.mxu0 %v1167
        %v1169 = vand.u32 %v720, 4294901760
        %v1170 = vsub.f32 %v720, %v1169
        %v1171 = vand.u32 %v1170, 4294901760
        %1172 = vmatpush.msra.mxu0 %v1171
        %v1173 = vand.u32 %v786, 4294901760
        %1174 = vmatmul.f32.gmra.mxu0 %v1173
        %v1175 = vpop.f32.mrf.mxu0
        %v1176 = vadd.f32 %v1089, %v1175
        %v1177 = vand.u32 %v789, 4294901760
        %1178 = vmatmul.f32.gmra.mxu0 %v1177
        %v1179 = vpop.f32.mrf.mxu0
        %v1180 = vadd.f32 %v1095, %v1179
        %v1181 = vand.u32 %v792, 4294901760
        %1182 = vmatmul.f32.gmra.mxu0 %v1181
        %v1183 = vpop.f32.mrf.mxu0
        %v1184 = vadd.f32 %v1101, %v1183
        %v1185 = vand.u32 %v795, 4294901760
        %1186 = vmatmul.f32.gmra.mxu0 %v1185
        %v1187 = vpop.f32.mrf.mxu0
        %v1188 = vadd.f32 %v1107, %v1187
        %v1189 = vand.u32 %v798, 4294901760
        %1190 = vmatmul.f32.gmra.mxu0 %v1189
        %v1191 = vpop.f32.mrf.mxu0
        %v1192 = vadd.f32 %v1113, %v1191
        %v1193 = vand.u32 %v801, 4294901760
        %1194 = vmatmul.f32.gmra.mxu0 %v1193
        %v1195 = vpop.f32.mrf.mxu0
        %v1196 = vadd.f32 %v1119, %v1195
        %v1197 = vand.u32 %v804, 4294901760
        %1198 = vmatmul.f32.gmra.mxu0 %v1197
        %v1199 = vpop.f32.mrf.mxu0
        %v1200 = vadd.f32 %v1125, %v1199
        %v1201 = vand.u32 %v807, 4294901760
        %1202 = vmatmul.f32.gmra.mxu0 %v1201
        %v1203 = vpop.f32.mrf.mxu0
        %v1204 = vadd.f32 %v1131, %v1203
        %1205 = vdwg.mxu0
        %1206 = vmatpush.msra.mxu0 0.0
        %1207 = vmatpush.msra.mxu0 0.0
        %1208 = vmatpush.msra.mxu0 0.0
        %1209 = vmatpush.msra.mxu0 0.0
        %1210 = vmatpush.msra.mxu0 0.0
        %1211 = vmatpush.msra.mxu0 0.0
        %1212 = vmatpush.msra.mxu0 0.0
        %1213 = vmatpush.msra.mxu0 0.0
        %v1214 = vand.u32 %v727, 4294901760
        %1215 = vmatpush.msra.mxu0 %v1214
        %v1216 = vand.u32 %v726, 4294901760
        %1217 = vmatpush.msra.mxu0 %v1216
        %v1218 = vand.u32 %v725, 4294901760
        %1219 = vmatpush.msra.mxu0 %v1218
        %v1220 = vand.u32 %v724, 4294901760
        %1221 = vmatpush.msra.mxu0 %v1220
        %v1222 = vand.u32 %v723, 4294901760
        %1223 = vmatpush.msra.mxu0 %v1222
        %v1224 = vand.u32 %v722, 4294901760
        %1225 = vmatpush.msra.mxu0 %v1224
        %v1226 = vand.u32 %v721, 4294901760
        %1227 = vmatpush.msra.mxu0 %v1226
        %v1228 = vand.u32 %v720, 4294901760
        %1229 = vmatpush.msra.mxu0 %v1228
        %v1230 = vand.u32 %v786, 4294901760
        %1231 = vmatmul.f32.gmra.mxu0 %v1230
        %v1232 = vpop.f32.mrf.mxu0
        %v1233 = vadd.f32 %v1176, %v1232
        %v1234 = vand.u32 %v789, 4294901760
        %1235 = vmatmul.f32.gmra.mxu0 %v1234
        %v1236 = vpop.f32.mrf.mxu0
        %v1237 = vadd.f32 %v1180, %v1236
        %v1238 = vand.u32 %v792, 4294901760
        %1239 = vmatmul.f32.gmra.mxu0 %v1238
        %v1240 = vpop.f32.mrf.mxu0
        %v1241 = vadd.f32 %v1184, %v1240
        %v1242 = vand.u32 %v795, 4294901760
        %1243 = vmatmul.f32.gmra.mxu0 %v1242
        %v1244 = vpop.f32.mrf.mxu0
        %v1245 = vadd.f32 %v1188, %v1244
        %v1246 = vand.u32 %v798, 4294901760
        %1247 = vmatmul.f32.gmra.mxu0 %v1246
        %v1248 = vpop.f32.mrf.mxu0
        %v1249 = vadd.f32 %v1192, %v1248
        %v1250 = vand.u32 %v801, 4294901760
        %1251 = vmatmul.f32.gmra.mxu0 %v1250
        %v1252 = vpop.f32.mrf.mxu0
        %v1253 = vadd.f32 %v1196, %v1252
        %v1254 = vand.u32 %v804, 4294901760
        %1255 = vmatmul.f32.gmra.mxu0 %v1254
        %v1256 = vpop.f32.mrf.mxu0
        %v1257 = vadd.f32 %v1200, %v1256
        %v1258 = vand.u32 %v807, 4294901760
        %1259 = vmatmul.f32.gmra.mxu0 %v1258
        %v1260 = vpop.f32.mrf.mxu0
        %v1261 = vadd.f32 %v1204, %v1260
        %1262 = vdwg.mxu0
        %v1263 = vmax.f32 %v1233, 0.0
        %v1264 = vmax.f32 %v1237, 0.0
        %v1265 = vmax.f32 %v1241, 0.0
        %v1266 = vmax.f32 %v1245, 0.0
        %v1267 = vmax.f32 %v1249, 0.0
        %v1268 = vmax.f32 %v1253, 0.0
        %v1269 = vmax.f32 %v1257, 0.0
        %v1270 = vmax.f32 %v1261, 0.0
        %v1271 = vld [vmem:[%s5] sm:$0x1]
        %v1272 = vld [vmem:[#allocation2] sm:$0x1]
        %1274 = vset.pattern.permute.xlu0 0
        %1275 = vperm.xlu0 %1274, %v1272
        %v1276 = vpop.permute.xlu0 %1275
        %v1278 = vperm.slane %v1276, 0
        %v1280 = vsel %vm784, %v1271, 0
        %1282 = vmatpush.msra.mxu0 0.0
        %1283 = vmatpush.msra.mxu0 0.0
        %1284 = vmatpush.msra.mxu0 0.0
        %1285 = vmatpush.msra.mxu0 0.0
        %1286 = vmatpush.msra.mxu0 0.0
        %1287 = vmatpush.msra.mxu0 0.0
        %1288 = vmatpush.msra.mxu0 0.0
        %1289 = vmatpush.msra.mxu0 0.0
        %v1290 = vand.u32 %v1270, 4294901760
        %1291 = vmatpush.msra.mxu0 %v1290
        %v1292 = vand.u32 %v1269, 4294901760
        %1293 = vmatpush.msra.mxu0 %v1292
        %v1294 = vand.u32 %v1268, 4294901760
        %1295 = vmatpush.msra.mxu0 %v1294
        %v1296 = vand.u32 %v1267, 4294901760
        %1297 = vmatpush.msra.mxu0 %v1296
        %v1298 = vand.u32 %v1266, 4294901760
        %1299 = vmatpush.msra.mxu0 %v1298
        %v1300 = vand.u32 %v1265, 4294901760
        %1301 = vmatpush.msra.mxu0 %v1300
        %v1302 = vand.u32 %v1264, 4294901760
        %1303 = vmatpush.msra.mxu0 %v1302
        %v1304 = vand.u32 %v1263, 4294901760
        %1305 = vmatpush.msra.mxu0 %v1304
        %v1306 = vand.u32 %v1280, 4294901760
        %v1307 = vsub.f32 %v1280, %v1306
        %v1308 = vand.u32 %v1307, 4294901760
        %v1309 = vsub.f32 %v1307, %v1308
        %v1310 = vand.u32 %v1309, 4294901760
        %1311 = vmatmul.f32.gmra.mxu0 %v1310
        %v1312 = vpop.f32.mrf.mxu0
        %v1313 = vadd.f32 %v1278, %v1312
        %1314 = vdwg.mxu0
        %1315 = vmatpush.msra.mxu0 0.0
        %1316 = vmatpush.msra.mxu0 0.0
        %1317 = vmatpush.msra.mxu0 0.0
        %1318 = vmatpush.msra.mxu0 0.0
        %1319 = vmatpush.msra.mxu0 0.0
        %1320 = vmatpush.msra.mxu0 0.0
        %1321 = vmatpush.msra.mxu0 0.0
        %1322 = vmatpush.msra.mxu0 0.0
        %v1323 = vand.u32 %v1270, 4294901760
        %v1324 = vsub.f32 %v1270, %v1323
        %v1325 = vand.u32 %v1324, 4294901760
        %v1326 = vsub.f32 %v1324, %v1325
        %v1327 = vand.u32 %v1326, 4294901760
        %1328 = vmatpush.msra.mxu0 %v1327
        %v1329 = vand.u32 %v1269, 4294901760
        %v1330 = vsub.f32 %v1269, %v1329
        %v1331 = vand.u32 %v1330, 4294901760
        %v1332 = vsub.f32 %v1330, %v1331
        %v1333 = vand.u32 %v1332, 4294901760
        %1334 = vmatpush.msra.mxu0 %v1333
        %v1335 = vand.u32 %v1268, 4294901760
        %v1336 = vsub.f32 %v1268, %v1335
        %v1337 = vand.u32 %v1336, 4294901760
        %v1338 = vsub.f32 %v1336, %v1337
        %v1339 = vand.u32 %v1338, 4294901760
        %1340 = vmatpush.msra.mxu0 %v1339
        %v1341 = vand.u32 %v1267, 4294901760
        %v1342 = vsub.f32 %v1267, %v1341
        %v1343 = vand.u32 %v1342, 4294901760
        %v1344 = vsub.f32 %v1342, %v1343
        %v1345 = vand.u32 %v1344, 4294901760
        %1346 = vmatpush.msra.mxu0 %v1345
        %v1347 = vand.u32 %v1266, 4294901760
        %v1348 = vsub.f32 %v1266, %v1347
        %v1349 = vand.u32 %v1348, 4294901760
        %v1350 = vsub.f32 %v1348, %v1349
        %v1351 = vand.u32 %v1350, 4294901760
        %1352 = vmatpush.msra.mxu0 %v1351
        %v1353 = vand.u32 %v1265, 4294901760
        %v1354 = vsub.f32 %v1265, %v1353
        %v1355 = vand.u32 %v1354, 4294901760
        %v1356 = vsub.f32 %v1354, %v1355
        %v1357 = vand.u32 %v1356, 4294901760
        %1358 = vmatpush.msra.mxu0 %v1357
        %v1359 = vand.u32 %v1264, 4294901760
        %v1360 = vsub.f32 %v1264, %v1359
        %v1361 = vand.u32 %v1360, 4294901760
        %v1362 = vsub.f32 %v1360, %v1361
        %v1363 = vand.u32 %v1362, 4294901760
        %1364 = vmatpush.msra.mxu0 %v1363
        %v1365 = vand.u32 %v1263, 4294901760
        %v1366 = vsub.f32 %v1263, %v1365
        %v1367 = vand.u32 %v1366, 4294901760
        %v1368 = vsub.f32 %v1366, %v1367
        %v1369 = vand.u32 %v1368, 4294901760
        %1370 = vmatpush.msra.mxu0 %v1369
        %v1371 = vand.u32 %v1280, 4294901760
        %1372 = vmatmul.f32.gmra.mxu0 %v1371
        %v1373 = vpop.f32.mrf.mxu0
        %v1374 = vadd.f32 %v1313, %v1373
        %1375 = vdwg.mxu0
        %1376 = vmatpush.msra.mxu0 0.0
        %1377 = vmatpush.msra.mxu0 0.0
        %1378 = vmatpush.msra.mxu0 0.0
        %1379 = vmatpush.msra.mxu0 0.0
        %1380 = vmatpush.msra.mxu0 0.0
        %1381 = vmatpush.msra.mxu0 0.0
        %1382 = vmatpush.msra.mxu0 0.0
        %1383 = vmatpush.msra.mxu0 0.0
        %v1384 = vand.u32 %v1270, 4294901760
        %v1385 = vsub.f32 %v1270, %v1384
        %1386 = vmatpush.msra.mxu0 %v1385
        %v1387 = vand.u32 %v1269, 4294901760
        %v1388 = vsub.f32 %v1269, %v1387
        %1389 = vmatpush.msra.mxu0 %v1388
        %v1390 = vand.u32 %v1268, 4294901760
        %v1391 = vsub.f32 %v1268, %v1390
        %1392 = vmatpush.msra.mxu0 %v1391
        %v1393 = vand.u32 %v1267, 4294901760
        %v1394 = vsub.f32 %v1267, %v1393
        %1395 = vmatpush.msra.mxu0 %v1394
        %v1396 = vand.u32 %v1266, 4294901760
        %v1397 = vsub.f32 %v1266, %v1396
        %1398 = vmatpush.msra.mxu0 %v1397
        %v1399 = vand.u32 %v1265, 4294901760
        %v1400 = vsub.f32 %v1265, %v1399
        %1401 = vmatpush.msra.mxu0 %v1400
        %v1402 = vand.u32 %v1264, 4294901760
        %v1403 = vsub.f32 %v1264, %v1402
        %1404 = vmatpush.msra.mxu0 %v1403
        %v1405 = vand.u32 %v1263, 4294901760
        %v1406 = vsub.f32 %v1263, %v1405
        %1407 = vmatpush.msra.mxu0 %v1406
        %v1408 = vand.u32 %v1280, 4294901760
        %v1409 = vsub.f32 %v1280, %v1408
        %1410 = vmatmul.f32.gmra.mxu0 %v1409
        %v1411 = vpop.f32.mrf.mxu0
        %v1412 = vadd.f32 %v1374, %v1411
        %1413 = vdwg.mxu0
        %1414 = vmatpush.msra.mxu0 0.0
        %1415 = vmatpush.msra.mxu0 0.0
        %1416 = vmatpush.msra.mxu0 0.0
        %1417 = vmatpush.msra.mxu0 0.0
        %1418 = vmatpush.msra.mxu0 0.0
        %1419 = vmatpush.msra.mxu0 0.0
        %1420 = vmatpush.msra.mxu0 0.0
        %1421 = vmatpush.msra.mxu0 0.0
        %v1422 = vand.u32 %v1270, 4294901760
        %1423 = vmatpush.msra.mxu0 %v1422
        %v1424 = vand.u32 %v1269, 4294901760
        %1425 = vmatpush.msra.mxu0 %v1424
        %v1426 = vand.u32 %v1268, 4294901760
        %1427 = vmatpush.msra.mxu0 %v1426
        %v1428 = vand.u32 %v1267, 4294901760
        %1429 = vmatpush.msra.mxu0 %v1428
        %v1430 = vand.u32 %v1266, 4294901760
        %1431 = vmatpush.msra.mxu0 %v1430
        %v1432 = vand.u32 %v1265, 4294901760
        %1433 = vmatpush.msra.mxu0 %v1432
        %v1434 = vand.u32 %v1264, 4294901760
        %1435 = vmatpush.msra.mxu0 %v1434
        %v1436 = vand.u32 %v1263, 4294901760
        %1437 = vmatpush.msra.mxu0 %v1436
        %v1438 = vand.u32 %v1280, 4294901760
        %v1439 = vsub.f32 %v1280, %v1438
        %v1440 = vand.u32 %v1439, 4294901760
        %1441 = vmatmul.f32.gmra.mxu0 %v1440
        %v1442 = vpop.f32.mrf.mxu0
        %v1443 = vadd.f32 %v1412, %v1442
        %1444 = vdwg.mxu0
        %1445 = vmatpush.msra.mxu0 0.0
        %1446 = vmatpush.msra.mxu0 0.0
        %1447 = vmatpush.msra.mxu0 0.0
        %1448 = vmatpush.msra.mxu0 0.0
        %1449 = vmatpush.msra.mxu0 0.0
        %1450 = vmatpush.msra.mxu0 0.0
        %1451 = vmatpush.msra.mxu0 0.0
        %1452 = vmatpush.msra.mxu0 0.0
        %v1453 = vand.u32 %v1270, 4294901760
        %v1454 = vsub.f32 %v1270, %v1453
        %v1455 = vand.u32 %v1454, 4294901760
        %1456 = vmatpush.msra.mxu0 %v1455
        %v1457 = vand.u32 %v1269, 4294901760
        %v1458 = vsub.f32 %v1269, %v1457
        %v1459 = vand.u32 %v1458, 4294901760
        %1460 = vmatpush.msra.mxu0 %v1459
        %v1461 = vand.u32 %v1268, 4294901760
        %v1462 = vsub.f32 %v1268, %v1461
        %v1463 = vand.u32 %v1462, 4294901760
        %1464 = vmatpush.msra.mxu0 %v1463
        %v1465 = vand.u32 %v1267, 4294901760
        %v1466 = vsub.f32 %v1267, %v1465
        %v1467 = vand.u32 %v1466, 4294901760
        %1468 = vmatpush.msra.mxu0 %v1467
        %v1469 = vand.u32 %v1266, 4294901760
        %v1470 = vsub.f32 %v1266, %v1469
        %v1471 = vand.u32 %v1470, 4294901760
        %1472 = vmatpush.msra.mxu0 %v1471
        %v1473 = vand.u32 %v1265, 4294901760
        %v1474 = vsub.f32 %v1265, %v1473
        %v1475 = vand.u32 %v1474, 4294901760
        %1476 = vmatpush.msra.mxu0 %v1475
        %v1477 = vand.u32 %v1264, 4294901760
        %v1478 = vsub.f32 %v1264, %v1477
        %v1479 = vand.u32 %v1478, 4294901760
        %1480 = vmatpush.msra.mxu0 %v1479
        %v1481 = vand.u32 %v1263, 4294901760
        %v1482 = vsub.f32 %v1263, %v1481
        %v1483 = vand.u32 %v1482, 4294901760
        %1484 = vmatpush.msra.mxu0 %v1483
        %v1485 = vand.u32 %v1280, 4294901760
        %1486 = vmatmul.f32.gmra.mxu0 %v1485
        %v1487 = vpop.f32.mrf.mxu0
        %v1488 = vadd.f32 %v1443, %v1487
        %1489 = vdwg.mxu0
        %1490 = vmatpush.msra.mxu0 0.0
        %1491 = vmatpush.msra.mxu0 0.0
        %1492 = vmatpush.msra.mxu0 0.0
        %1493 = vmatpush.msra.mxu0 0.0
        %1494 = vmatpush.msra.mxu0 0.0
        %1495 = vmatpush.msra.mxu0 0.0
        %1496 = vmatpush.msra.mxu0 0.0
        %1497 = vmatpush.msra.mxu0 0.0
        %v1498 = vand.u32 %v1270, 4294901760
        %1499 = vmatpush.msra.mxu0 %v1498
        %v1500 = vand.u32 %v1269, 4294901760
        %1501 = vmatpush.msra.mxu0 %v1500
        %v1502 = vand.u32 %v1268, 4294901760
        %1503 = vmatpush.msra.mxu0 %v1502
        %v1504 = vand.u32 %v1267, 4294901760
        %1505 = vmatpush.msra.mxu0 %v1504
        %v1506 = vand.u32 %v1266, 4294901760
        %1507 = vmatpush.msra.mxu0 %v1506
        %v1508 = vand.u32 %v1265, 4294901760
        %1509 = vmatpush.msra.mxu0 %v1508
        %v1510 = vand.u32 %v1264, 4294901760
        %1511 = vmatpush.msra.mxu0 %v1510
        %v1512 = vand.u32 %v1263, 4294901760
        %1513 = vmatpush.msra.mxu0 %v1512
        %v1514 = vand.u32 %v1280, 4294901760
        %1515 = vmatmul.f32.gmra.mxu0 %v1514
        %v1516 = vpop.f32.mrf.mxu0
        %v1517 = vadd.f32 %v1488, %v1516
        %1518 = vdwg.mxu0
        %1519 = vst [vmem:[%s270] sm:$0x1] %v1517
        %s1520 = sand.u32 %s183, 1
        %s1521 = scalar_lea.sflag [#allocation4], %s1520
        %s1522 = sand.u32 %s183, 1
        %s1523 = scalar_lea.vmem [#allocation3], %s1522
        // Predicated region
        $region49: #{tpu_custom_call.1} parent=47 // pred_check
          %p1524 = pneg %p193
        $region50: #{tpu_custom_call.1} parent=47 // pred_check_branch
          %1526 = sbr.rel (%p1524) target = $region52
        $region51: #{tpu_custom_call.1} parent=47 // pred_region
          %1528 = vsyncadd %s1521, 0
          %s1529 = scalar_lea.hbm %s7, %s23
          %s1531 = sshll.u32 %s1523, 4
          %s1532 = int_to_ptr.vmem [resolvable:$true] %s1531
          %s1533 = sshll.u32 %s1529, 4
          %s1534 = int_to_ptr.hbm [resolvable:$true] %s1533
          %1536 = dma.vmem_to_hbm [thread:$0]  %s1532, 16, %s1534, %s1521
        $region52: #{tpu_custom_call.1} parent=47 // pred_fallthru
          _
      $region48: #{tpu_custom_call.1} parent=5 // pred_fallthru
        _
      %p1537 = scmp.le.s32.totalorder 2, %s18
      // Predicated region
      $region53: #{tpu_custom_call.1} parent=5 // pred_check
        %p1538 = pneg %p1537
      $region54: #{tpu_custom_call.1} parent=5 // pred_check_branch
        %1540 = sbr.rel (%p1538) target = $region56
      $region55: #{tpu_custom_call.1} parent=5 // pred_region
        %s1541 = ssub.s32 %s18, 2
        // Predicated region
        $region57: #{tpu_custom_call.1} parent=55 // pred_check
          %p1542 = pneg %p199
        $region58: #{tpu_custom_call.1} parent=55 // pred_check_branch
          %1544 = sbr.rel (%p1542) target = $region60
        $region59: #{tpu_custom_call.1} parent=55 // pred_region
          %s1545 = sand.u32 %s184, 1
          %s1546 = scalar_lea.sflag [#allocation4], %s1545
          %s1547 = sand.u32 %s184, 1
          %s1548 = scalar_lea.vmem [#allocation3], %s1547
          %1550 = dma.done %s1546, 16
        $region60: #{tpu_custom_call.1} parent=55 // pred_fallthru
          _
      $region56: #{tpu_custom_call.1} parent=5 // pred_fallthru
        _
    $region6: #{tpu_custom_call.1} parent=1 // loop_footer
      %s22 = sadd.s32 1, %s18
    $region7: #{tpu_custom_call.1} parent=1 // loop_footer_branch
      %17 = sbr.rel target = $region3
    $region8: #{tpu_custom_call.1} parent=1 // loop_exit
      _
    %1551 = vsyncpa [#allocation4], 1
    %s1552 = scalar_lea.sflag [#allocation4], 1
    %1553 = vsyncpa %s1552, 1

</llo_original>
